<compile_context>
chip_gen: v7x
topology: tpu7x:2x2x1
jax: 0.10.0
libtpu: 0.0.40
codegen_flags: <defaults>
</compile_context>

<pallas_src>
import functools
import math

import jax
import jax.numpy as jnp
from jax import lax
from jax.experimental import pallas as pl
from jax.experimental.pallas import tpu as pltpu


def _round_up(x, m):
    return ((x + m - 1) // m) * m


def _cdiv(a, b):
    return (a + b - 1) // b


def _pick_head_group(num_heads, head_dim):
    """Smallest divisor GH of num_heads with GH*head_dim >= 128 (lane-dense
    packed output); falls back to the largest divisor <= 32."""
    best = 1
    for g in range(1, num_heads + 1):
        if num_heads % g:
            continue
        if g > 32:
            break
        best = g
        if g * head_dim >= 128:
            break
    return best


def _flash_attention_kernel(q_ref, k_ref, v_ref, o_ref, qs_ref, m_ref, acc_ref,
                            *, scale, head_dim, kv_len, block_k):
    """One (batch, head-group, q-block, kv-block) grid step.

    q_ref  : (GH, tq, E)    native input dtype
    k_ref  : (GH, tk, E)    compute dtype (bf16 on the MXU path)
    v_ref  : (GH, tk, D+1)  compute dtype; column D is all-ones (row-sum of p
                            comes out of the MXU instead of an XLU reduce)
    o_ref  : (tq, GH*D)     lane-dense head-packed output block
    qs_ref : (GH, tq, E)    compute-dtype scratch holding scale*q (hoisted)
    m_ref  : (GH, tq, 128)  f32 running max, value broadcast across lanes
    acc_ref: (GH, tq, D+1)  f32 accumulator; column D carries the denominator l
    """
    kv_idx = pl.program_id(3)
    gh = acc_ref.shape[0]
    d = head_dim

    @pl.when(kv_idx == 0)
    def _init():
        # Hoisted q-scaling: q is resident across the kv axis, so scale it once
        # per q block.  Scale in f32, round once into the compute dtype.
        qs_ref[...] = (q_ref[...].astype(jnp.float32) * scale).astype(qs_ref.dtype)
        m_ref[...] = jnp.full(m_ref.shape, -jnp.inf, dtype=m_ref.dtype)
        acc_ref[...] = jnp.zeros(acc_ref.shape, dtype=acc_ref.dtype)

    q = qs_ref[...]                                   # (GH, tq, E)
    k = k_ref[...]                                    # (GH, tk, E)

    # scores[g,l,s] = sum_e q[g,l,e]*k[g,s,e]; k-transpose folded into the MXU
    # contraction, f32 accumulation.
    s = jnp.einsum("gqe,gke->gqk", q, k,
                   preferred_element_type=jnp.float32)        # (GH, tq, tk) f32

    if kv_len % block_k != 0:
        # Padded keys exist only in the last kv block; mask them with a large
        # finite negative so they vanish from the softmax (no inf-inf NaNs).
        kpos = kv_idx * block_k + lax.broadcasted_iota(
            jnp.int32, (1, 1, block_k), 2)
        s = jnp.where(kpos < kv_len, s, -1e30)

    m_prev = m_ref[...]                               # (GH, tq, 128), lane-uniform
    row_max = jnp.max(s, axis=-1, keepdims=True)      # (GH, tq, 1)
    m_next = jnp.maximum(m_prev, row_max)             # (GH, tq, 128), lane-uniform
    alpha = jnp.exp(m_prev - m_next)                  # (GH, tq, 128)

    # p produced directly in the compute dtype (single cast); it is consumed
    # only by the MXU — the l row-sum rides along as the ones-column of v.
    p = jnp.exp(s - m_next[..., 0:1]).astype(v_ref.dtype)     # (GH, tq, tk)

    pv = jnp.einsum("gqk,gkd->gqd", p, v_ref[...],
                    preferred_element_type=jnp.float32)       # (GH, tq, D+1)
    acc_ref[...] = acc_ref[...] * alpha[..., 0:1] + pv
    m_ref[...] = m_next

    @pl.when(kv_idx == pl.num_programs(3) - 1)
    def _finalize():
        acc = acc_ref[...]
        # Exact reciprocal: runs once per q block (negligible cost) and avoids
        # the approx-EUP perturbation flagged in the review.
        inv_l = 1.0 / acc[..., d:d + 1]                       # (GH, tq, 1)
        out = acc[..., :d] * inv_l                            # (GH, tq, D) f32
        # Pack the head group into the lane dimension -> one dense store.
        o_ref[...] = jnp.concatenate(
            [out[g] for g in range(gh)], axis=-1).astype(o_ref.dtype)


def full_attention(queries, keys, values, scale=None, *,
                   prefer_bf16_matmul=True,
                   q_block_target=None, k_block_target=512):
    """Pallas implementation of FullAttention.forward (eval mode).

    queries: (B, L, H, E), keys: (B, S, H, E), values: (B, S, H, D)
    returns: (B, L, H, D)
    """
    B, L, H, E = queries.shape
    _, S, _, D = values.shape
    scale = float(scale) if scale is not None else 1.0 / math.sqrt(E)
    out_dtype = queries.dtype

    # MXU compute dtype: bf16 on every generation (v7x is bf16/fp8-only; f32
    # matmuls are far below native rate on v5e/v6e too).  Softmax math stays
    # in f32 inside the kernel.  Small, documented precision trade.
    if prefer_bf16_matmul and queries.dtype != jnp.bfloat16:
        compute_dtype = jnp.bfloat16
    else:
        compute_dtype = queries.dtype

    # Head-group packing so the packed output last dim (GH*D) is lane-dense.
    GH = _pick_head_group(H, D)
    Hg = H // GH
    Dp = D + 1                                         # +1 ones column for l

    # ---- tile selection --------------------------------------------------
    # q tile: as large as sensible; K/V re-streaming scales as ceil(L/tq).
    # The score tensor (GH, tq, tk) is the VMEM driver, so scale the target by
    # the head-group size instead of capping per TPU generation.
    if q_block_target is None:
        q_block_target = min(2048, max(128, 4096 // GH))
    q_block_target = max(8, (q_block_target // 8) * 8)
    k_block_target = max(128, (k_block_target // 128) * 128)

    tq = min(q_block_target, _round_up(L, 8))
    # keep >= 2 parallel grid steps so both v7x TensorCores get work
    while B * Hg * _cdiv(L, tq) < 2 and tq > 8:
        tq = max(8, _round_up(tq // 2, 8))
    Lp = _round_up(L, tq)

    # kv tile: multiple of 128 (lane-dense scores); pad S to a 128-multiple and
    # pick the largest tile <= target dividing it (minimal key padding).
    Sp = _round_up(S, 128)
    tk = 128
    for cand in range(min(k_block_target, Sp), 127, -128):
        if Sp % cand == 0:
            tk = cand
            break

    # ---- layout prep (wrapper-side plumbing only) ------------------------
    q = jnp.transpose(queries, (0, 2, 1, 3))                       # (B,H,L,E)
    k = jnp.transpose(keys, (0, 2, 1, 3)).astype(compute_dtype)    # (B,H,S,E)
    v = jnp.transpose(values, (0, 2, 1, 3)).astype(compute_dtype)  # (B,H,S,D)
    # ones column: softmax denominator comes out of the p@v MXU matmul.
    v = jnp.concatenate([v, jnp.ones((B, H, S, 1), compute_dtype)], axis=-1)

    if Lp != L:
        q = jnp.pad(q, ((0, 0), (0, 0), (0, Lp - L), (0, 0)))
    if Sp != S:
        k = jnp.pad(k, ((0, 0), (0, 0), (0, Sp - S), (0, 0)))
        v = jnp.pad(v, ((0, 0), (0, 0), (0, Sp - S), (0, 0)))

    try:
        vmem_cap = int(pltpu.get_tpu_info().vmem_capacity_bytes)
    except Exception:
        vmem_cap = 64 * 1024 * 1024
    vmem_limit = min((vmem_cap * 3) // 4, 100 * 1024 * 1024)

    grid = (B, Hg, Lp // tq, Sp // tk)
    kernel = functools.partial(_flash_attention_kernel, scale=scale,
                               head_dim=D, kv_len=S, block_k=tk)

    out_packed = pl.pallas_call(
        kernel,
        out_shape=jax.ShapeDtypeStruct((B, Hg, Lp, GH * D), out_dtype),
        grid=grid,
        in_specs=[
            pl.BlockSpec((pl.Squeezed(), GH, tq, E),
                         lambda b, hg, iq, ik: (b, hg, iq, 0)),
            pl.BlockSpec((pl.Squeezed(), GH, tk, E),
                         lambda b, hg, iq, ik: (b, hg, ik, 0)),
            pl.BlockSpec((pl.Squeezed(), GH, tk, Dp),
                         lambda b, hg, iq, ik: (b, hg, ik, 0)),
        ],
        out_specs=pl.BlockSpec((pl.Squeezed(), pl.Squeezed(), tq, GH * D),
                               lambda b, hg, iq, ik: (b, hg, iq, 0)),
        scratch_shapes=[
            pltpu.VMEM((GH, tq, E), compute_dtype),    # hoisted scale*q
            pltpu.VMEM((GH, tq, 128), jnp.float32),    # running max m (lane-dense)
            pltpu.VMEM((GH, tq, Dp), jnp.float32),     # accumulator; col D = l
        ],
        compiler_params=pltpu.CompilerParams(
            dimension_semantics=("parallel", "parallel", "parallel",
                                 "arbitrary"),
            vmem_limit_bytes=vmem_limit,
        ),
    )(q, k, v)

    # unpack heads: (B, Hg, Lp, GH*D) -> (B, L, H, D)
    out = out_packed[:, :, :L, :]
    out = out.reshape(B, Hg, L, GH, D)
    out = jnp.transpose(out, (0, 2, 1, 3, 4)).reshape(B, L, H, D)
    return out


def _reference(queries, keys, values, scale=None):
    """Pure-JAX reference matching the PyTorch forward (eval mode)."""
    E = queries.shape[-1]
    scale = scale if scale is not None else 1.0 / math.sqrt(E)
    q32 = queries.astype(jnp.float32)
    k32 = keys.astype(jnp.float32)
    v32 = values.astype(jnp.float32)
    scores = jnp.einsum("blhe,bshe->bhls", q32, k32)
    A = jax.nn.softmax(scale * scores, axis=-1)
    return jnp.einsum("bhls,bshd->blhd", A, v32)


if __name__ == "__main__":
    # main shapes consistent with the module: B=2, L=S=8, H=4, E=D=32
    B, L, S, H, E, D = 2, 8, 8, 4, 32, 32
    ks = jax.random.split(jax.random.PRNGKey(0), 6)
    queries = jax.random.normal(ks[0], (B, L, H, E), dtype=jnp.float32)
    keys = jax.random.normal(ks[1], (B, S, H, E), dtype=jnp.float32)
    values = jax.random.normal(ks[2], (B, S, H, D), dtype=jnp.float32)

    ref = _reference(queries, keys, values)

    # Default path: bf16 MXU matmuls + f32 softmax (documented precision trade).
    out = jax.block_until_ready(full_attention(queries, keys, values))
    assert out.shape == (B, L, H, D), out.shape
    assert jnp.allclose(out, ref, atol=6e-2, rtol=6e-2), "bf16-MXU path mismatch"

    # Exact f32-matmul path (tight tolerance).
    out_f32 = jax.block_until_ready(
        full_attention(queries, keys, values, prefer_bf16_matmul=False))
    assert jnp.allclose(out_f32, ref, atol=1e-3, rtol=1e-3), "f32 path mismatch"

    # Native bf16 inputs.
    out_bf16 = jax.block_until_ready(
        full_attention(queries.astype(jnp.bfloat16),
                       keys.astype(jnp.bfloat16),
                       values.astype(jnp.bfloat16)))
    assert out_bf16.dtype == jnp.bfloat16
    assert jnp.allclose(out_bf16.astype(jnp.float32), ref,
                        atol=6e-2, rtol=6e-2), "bf16 input path mismatch"

    # Ragged lengths: exercises wrapper-side padding + in-kernel key masking
    # and the output slice-back.
    B2, L2, S2, H2, E2, D2 = 1, 12, 20, 2, 16, 16
    q2 = jax.random.normal(ks[3], (B2, L2, H2, E2), dtype=jnp.float32)
    k2 = jax.random.normal(ks[4], (B2, S2, H2, E2), dtype=jnp.float32)
    v2 = jax.random.normal(ks[5], (B2, S2, H2, D2), dtype=jnp.float32)
    ref2 = _reference(q2, k2, v2)
    out2 = jax.block_until_ready(full_attention(q2, k2, v2))
    assert out2.shape == (B2, L2, H2, D2), out2.shape
    assert jnp.allclose(out2, ref2, atol=6e-2, rtol=6e-2), "padded path mismatch"

    print("KERNEL_OK")
</pallas_src>

<mosaic_0001>
module attributes {stable_mosaic.version = 11 : i64} {
  func.func @_flash_attention_kernel(%arg0: i32, %arg1: i32, %arg2: i32, %arg3: i32, %arg4: memref<1x4x8x32xf32, #tpu.memory_space<vmem>>, %arg5: memref<1x4x128x32xbf16, #tpu.memory_space<vmem>>, %arg6: memref<1x4x128x33xbf16, #tpu.memory_space<vmem>>, %arg7: memref<1x1x8x128xf32, #tpu.memory_space<vmem>>, %arg8: memref<4x8x32xbf16, #tpu.memory_space<vmem>>, %arg9: memref<4x8x128xf32, #tpu.memory_space<vmem>>, %arg10: memref<4x8x33xf32, #tpu.memory_space<vmem>>) attributes {dimension_semantics = [#tpu.dimension_semantics<parallel>, #tpu.dimension_semantics<parallel>, #tpu.dimension_semantics<parallel>, #tpu.dimension_semantics<arbitrary>], iteration_bounds = array<i64: 2, 1, 1, 1>, scalar_prefetch = 0 : i64, scratch_operands = 3 : i64, tpu.core_type = #tpu.core_type<tc>, window_params = [{transform_indices = @transform_0, window_bounds = array<i64: 1, 4, 8, 32>}, {transform_indices = @transform_1, window_bounds = array<i64: 1, 4, 128, 32>}, {transform_indices = @transform_2, window_bounds = array<i64: 1, 4, 128, 33>}, {transform_indices = @transform_3, window_bounds = array<i64: 1, 1, 8, 128>}]} {
    %c0_i32 = arith.constant 0 : i32
    %0 = arith.cmpi eq, %arg3, %c0_i32 : i32
    %1 = arith.extui %0 : i1 to i32
    %c0_i32_0 = arith.constant 0 : i32
    %2 = arith.cmpi ne, %1, %c0_i32_0 : i32
    scf.if %2 {
      %c0_28 = arith.constant 0 : index
      %c0_29 = arith.constant 0 : index
      %c0_30 = arith.constant 0 : index
      %c0_31 = arith.constant 0 : index
      %42 = vector.load %arg4[%c0_28, %c0_29, %c0_30, %c0_31] : memref<1x4x8x32xf32, #tpu.memory_space<vmem>>, vector<1x4x8x32xf32>
      %43 = vector.shape_cast %42 : vector<1x4x8x32xf32> to vector<4x8x32xf32>
      %cst_32 = arith.constant 0.176776692 : f32
      %44 = vector.broadcast %cst_32 : f32 to vector<4x8x32xf32>
      %45 = arith.mulf %43, %44 : vector<4x8x32xf32>
      %46 = arith.truncf %45 : vector<4x8x32xf32> to vector<4x8x32xbf16>
      %c0_33 = arith.constant 0 : index
      %c0_34 = arith.constant 0 : index
      %c0_35 = arith.constant 0 : index
      %47 = vector.load %arg8[%c0_33, %c0_34, %c0_35] : memref<4x8x32xbf16, #tpu.memory_space<vmem>>, vector<4x8x32xbf16>
      tpu.vector_store %arg8[%c0_33, %c0_34, %c0_35], %46 {strides = array<i32>} : memref<4x8x32xbf16, #tpu.memory_space<vmem>>, vector<4x8x32xbf16>,
      %cst_36 = arith.constant 0xFF800000 : f32
      %48 = vector.broadcast %cst_36 : f32 to vector<4x8x128xf32>
      %c0_37 = arith.constant 0 : index
      %c0_38 = arith.constant 0 : index
      %c0_39 = arith.constant 0 : index
      %49 = vector.load %arg9[%c0_37, %c0_38, %c0_39] : memref<4x8x128xf32, #tpu.memory_space<vmem>>, vector<4x8x128xf32>
      tpu.vector_store %arg9[%c0_37, %c0_38, %c0_39], %48 {strides = array<i32>} : memref<4x8x128xf32, #tpu.memory_space<vmem>>, vector<4x8x128xf32>,
      %cst_40 = arith.constant 0.000000e+00 : f32
      %50 = vector.broadcast %cst_40 : f32 to vector<4x8x33xf32>
      %c0_41 = arith.constant 0 : index
      %c0_42 = arith.constant 0 : index
      %c0_43 = arith.constant 0 : index
      %51 = vector.load %arg10[%c0_41, %c0_42, %c0_43] : memref<4x8x33xf32, #tpu.memory_space<vmem>>, vector<4x8x33xf32>
      tpu.vector_store %arg10[%c0_41, %c0_42, %c0_43], %50 {strides = array<i32>} : memref<4x8x33xf32, #tpu.memory_space<vmem>>, vector<4x8x33xf32>,
    } else {
    }
    %c0 = arith.constant 0 : index
    %c0_1 = arith.constant 0 : index
    %c0_2 = arith.constant 0 : index
    %3 = vector.load %arg8[%c0, %c0_1, %c0_2] : memref<4x8x32xbf16, #tpu.memory_space<vmem>>, vector<4x8x32xbf16>
    %c0_3 = arith.constant 0 : index
    %c0_4 = arith.constant 0 : index
    %c0_5 = arith.constant 0 : index
    %c0_6 = arith.constant 0 : index
    %4 = vector.load %arg5[%c0_3, %c0_4, %c0_5, %c0_6] : memref<1x4x128x32xbf16, #tpu.memory_space<vmem>>, vector<1x4x128x32xbf16>
    %5 = vector.shape_cast %4 : vector<1x4x128x32xbf16> to vector<4x128x32xbf16>
    "tpu.trace_start"() <{level = 10 : i32, message = "gqe,gke->gqk"}> : () -> ()
    %cst = arith.constant dense<0.000000e+00> : vector<4x8x128xf32>
    %6 = tpu.matmul %3, %5, %cst {dimension_numbers = #tpu.dot_dimension_numbers<[2], [2], [1], [1], [0, 0, 0, 1, 1, 1], [0], [0]>} : vector<4x8x32xbf16>, vector<4x128x32xbf16>, vector<4x8x128xf32> -> vector<4x8x128xf32>
    "tpu.trace_stop"() : () -> ()
    %c128_i32 = arith.constant 128 : i32
    %7 = arith.muli %arg3, %c128_i32 : i32
    %8 = tpu.iota {dimensions = array<i32: 2>} : vector<1x1x128xi32>
    %9 = vector.broadcast %7 : i32 to vector<1x1x128xi32>
    %10 = arith.addi %9, %8 : vector<1x1x128xi32>
    %c8_i32 = arith.constant 8 : i32
    %11 = vector.broadcast %c8_i32 : i32 to vector<1x1x128xi32>
    %12 = arith.cmpi slt, %10, %11 : vector<1x1x128xi32>
    %cst_7 = arith.constant -1.000000e+30 : f32
    %13 = vector.shape_cast %12 : vector<1x1x128xi1> to vector<1x1x128xi1>
    %14 = vector.broadcast %13 : vector<1x1x128xi1> to vector<4x8x128xi1>
    %15 = vector.broadcast %cst_7 : f32 to vector<4x8x128xf32>
    %16 = arith.select %14, %6, %15 : vector<4x8x128xi1>, vector<4x8x128xf32>
    %c0_8 = arith.constant 0 : index
    %c0_9 = arith.constant 0 : index
    %c0_10 = arith.constant 0 : index
    %17 = vector.load %arg9[%c0_8, %c0_9, %c0_10] : memref<4x8x128xf32, #tpu.memory_space<vmem>>, vector<4x8x128xf32>
    %cst_11 = arith.constant dense<0xFF800000> : vector<4x8xf32>
    %18 = vector.multi_reduction <maximumf>, %16, %cst_11 [2] : vector<4x8x128xf32> to vector<4x8xf32>
    %19 = vector.shape_cast %18 : vector<4x8xf32> to vector<4x8x1xf32>
    %20 = vector.broadcast %19 : vector<4x8x1xf32> to vector<4x8x128xf32>
    %21 = arith.maximumf %17, %20 : vector<4x8x128xf32>
    %22 = arith.subf %17, %21 : vector<4x8x128xf32>
    %23 = math.exp %22 : vector<4x8x128xf32>
    %24 = vector.extract_strided_slice %21 {offsets = [0, 0, 0], sizes = [4, 8, 1], strides = [1, 1, 1]} : vector<4x8x128xf32> to vector<4x8x1xf32>
    %25 = vector.broadcast %24 : vector<4x8x1xf32> to vector<4x8x128xf32>
    %26 = arith.subf %16, %25 : vector<4x8x128xf32>
    %27 = math.exp %26 : vector<4x8x128xf32>
    %28 = arith.truncf %27 : vector<4x8x128xf32> to vector<4x8x128xbf16>
    %c0_12 = arith.constant 0 : index
    %c0_13 = arith.constant 0 : index
    %c0_14 = arith.constant 0 : index
    %c0_15 = arith.constant 0 : index
    %29 = vector.load %arg6[%c0_12, %c0_13, %c0_14, %c0_15] : memref<1x4x128x33xbf16, #tpu.memory_space<vmem>>, vector<1x4x128x33xbf16>
    %30 = vector.shape_cast %29 : vector<1x4x128x33xbf16> to vector<4x128x33xbf16>
    "tpu.trace_start"() <{level = 10 : i32, message = "gqk,gkd->gqd"}> : () -> ()
    %cst_16 = arith.constant dense<0.000000e+00> : vector<4x8x33xf32>
    %31 = tpu.matmul %28, %30, %cst_16 {dimension_numbers = #tpu.dot_dimension_numbers<[2], [1], [1], [2], [0, 0, 0, 1, 1, 2], [0], [0]>} : vector<4x8x128xbf16>, vector<4x128x33xbf16>, vector<4x8x33xf32> -> vector<4x8x33xf32>
    "tpu.trace_stop"() : () -> ()
    %c0_17 = arith.constant 0 : index
    %c0_18 = arith.constant 0 : index
    %c0_19 = arith.constant 0 : index
    %32 = vector.load %arg10[%c0_17, %c0_18, %c0_19] : memref<4x8x33xf32, #tpu.memory_space<vmem>>, vector<4x8x33xf32>
    %33 = vector.extract_strided_slice %23 {offsets = [0, 0, 0], sizes = [4, 8, 1], strides = [1, 1, 1]} : vector<4x8x128xf32> to vector<4x8x1xf32>
    %34 = vector.broadcast %33 : vector<4x8x1xf32> to vector<4x8x33xf32>
    %35 = arith.mulf %32, %34 : vector<4x8x33xf32>
    %36 = arith.addf %35, %31 : vector<4x8x33xf32>
    %c0_20 = arith.constant 0 : index
    %c0_21 = arith.constant 0 : index
    %c0_22 = arith.constant 0 : index
    %37 = vector.load %arg10[%c0_20, %c0_21, %c0_22] : memref<4x8x33xf32, #tpu.memory_space<vmem>>, vector<4x8x33xf32>
    tpu.vector_store %arg10[%c0_20, %c0_21, %c0_22], %36 {strides = array<i32>} : memref<4x8x33xf32, #tpu.memory_space<vmem>>, vector<4x8x33xf32>,
    %c0_23 = arith.constant 0 : index
    %c0_24 = arith.constant 0 : index
    %c0_25 = arith.constant 0 : index
    %38 = vector.load %arg9[%c0_23, %c0_24, %c0_25] : memref<4x8x128xf32, #tpu.memory_space<vmem>>, vector<4x8x128xf32>
    tpu.vector_store %arg9[%c0_23, %c0_24, %c0_25], %21 {strides = array<i32>} : memref<4x8x128xf32, #tpu.memory_space<vmem>>, vector<4x8x128xf32>,
    %c0_i32_26 = arith.constant 0 : i32
    %39 = arith.cmpi eq, %arg3, %c0_i32_26 : i32
    %40 = arith.extui %39 : i1 to i32
    %c0_i32_27 = arith.constant 0 : i32
    %41 = arith.cmpi ne, %40, %c0_i32_27 : i32
    scf.if %41 {
      %c0_28 = arith.constant 0 : index
      %c0_29 = arith.constant 0 : index
      %c0_30 = arith.constant 0 : index
      %42 = vector.load %arg10[%c0_28, %c0_29, %c0_30] : memref<4x8x33xf32, #tpu.memory_space<vmem>>, vector<4x8x33xf32>
      %43 = vector.extract_strided_slice %42 {offsets = [0, 0, 32], sizes = [4, 8, 1], strides = [1, 1, 1]} : vector<4x8x33xf32> to vector<4x8x1xf32>
      %cst_31 = arith.constant 1.000000e+00 : f32
      %44 = vector.broadcast %cst_31 : f32 to vector<4x8x1xf32>
      %45 = arith.divf %44, %43 : vector<4x8x1xf32>
      %46 = vector.extract_strided_slice %42 {offsets = [0, 0, 0], sizes = [4, 8, 32], strides = [1, 1, 1]} : vector<4x8x33xf32> to vector<4x8x32xf32>
      %47 = vector.broadcast %45 : vector<4x8x1xf32> to vector<4x8x32xf32>
      %48 = arith.mulf %46, %47 : vector<4x8x32xf32>
      %49 = vector.extract_strided_slice %48 {offsets = [0, 0, 0], sizes = [1, 8, 32], strides = [1, 1, 1]} : vector<4x8x32xf32> to vector<1x8x32xf32>
      %50 = vector.shape_cast %49 : vector<1x8x32xf32> to vector<8x32xf32>
      %51 = vector.extract_strided_slice %48 {offsets = [1, 0, 0], sizes = [1, 8, 32], strides = [1, 1, 1]} : vector<4x8x32xf32> to vector<1x8x32xf32>
      %52 = vector.shape_cast %51 : vector<1x8x32xf32> to vector<8x32xf32>
      %53 = vector.extract_strided_slice %48 {offsets = [2, 0, 0], sizes = [1, 8, 32], strides = [1, 1, 1]} : vector<4x8x32xf32> to vector<1x8x32xf32>
      %54 = vector.shape_cast %53 : vector<1x8x32xf32> to vector<8x32xf32>
      %55 = vector.extract_strided_slice %48 {offsets = [3, 0, 0], sizes = [1, 8, 32], strides = [1, 1, 1]} : vector<4x8x32xf32> to vector<1x8x32xf32>
      %56 = vector.shape_cast %55 : vector<1x8x32xf32> to vector<8x32xf32>
      %57 = tpu.concatenate %50, %52, %54, %56 in 1 : vector<8x32xf32>, vector<8x32xf32>, vector<8x32xf32>, vector<8x32xf32> -> vector<8x128xf32>
      %c0_32 = arith.constant 0 : index
      %c0_33 = arith.constant 0 : index
      %c0_34 = arith.constant 0 : index
      %c0_35 = arith.constant 0 : index
      %58 = vector.load %arg7[%c0_32, %c0_33, %c0_34, %c0_35] : memref<1x1x8x128xf32, #tpu.memory_space<vmem>>, vector<1x1x8x128xf32>
      %59 = vector.shape_cast %58 : vector<1x1x8x128xf32> to vector<8x128xf32>
      %60 = vector.shape_cast %57 : vector<8x128xf32> to vector<1x1x8x128xf32>
      tpu.vector_store %arg7[%c0_32, %c0_33, %c0_34, %c0_35], %60 {strides = array<i32>} : memref<1x1x8x128xf32, #tpu.memory_space<vmem>>, vector<1x1x8x128xf32>,
    } else {
    }
    return
  }
  func.func @transform_0(%arg0: i32, %arg1: i32, %arg2: i32, %arg3: i32) -> (i32, i32, i32, i32) {
    %c0_i32 = arith.constant 0 : i32
    %c0_i32_0 = arith.constant 0 : i32
    return %arg0, %arg1, %arg2, %c0_i32 : i32, i32, i32, i32
  }
  func.func @transform_1(%arg0: i32, %arg1: i32, %arg2: i32, %arg3: i32) -> (i32, i32, i32, i32) {
    %c0_i32 = arith.constant 0 : i32
    %c0_i32_0 = arith.constant 0 : i32
    return %arg0, %arg1, %arg3, %c0_i32 : i32, i32, i32, i32
  }
  func.func @transform_2(%arg0: i32, %arg1: i32, %arg2: i32, %arg3: i32) -> (i32, i32, i32, i32) {
    %c0_i32 = arith.constant 0 : i32
    %c0_i32_0 = arith.constant 0 : i32
    return %arg0, %arg1, %arg3, %c0_i32 : i32, i32, i32, i32
  }
  func.func @transform_3(%arg0: i32, %arg1: i32, %arg2: i32, %arg3: i32) -> (i32, i32, i32, i32) {
    %c0_i32 = arith.constant 0 : i32
    %c0_i32_0 = arith.constant 0 : i32
    return %arg0, %arg1, %arg2, %c0_i32 : i32, i32, i32, i32
  }
}

</mosaic_0001>

<llo_original>
// kernel: tpu_custom_call.1
$region0: #{tpu_custom_call.1}
  #allocation0 [shape = 'u32[]', space=smem, size = 0x4, offset = 0x4, fixed_abs, tag = 'smem constant byte address 0x4 - core index']
  #allocation1 [shape = 'u32[144,128]{1,0:T(1,128)}', space=vmem, size = 0x12000, scoped, tag = 'internal scratch']
  #allocation2 [shape = 'bf16[4,8,32]{2,1,0:T(8,128)(2,1)}', space=vmem, size = 0x2000, scoped, tag = 'scratch operand']
  #allocation3 [shape = 'f32[4,8,128]{2,1,0:T(8,128)}', space=vmem, size = 0x4000, scoped, tag = 'scratch operand']
  #allocation4 [shape = 'f32[4,8,33]{2,1,0:T(8,128)}', space=vmem, size = 0x4000, scoped, tag = 'scratch operand']
  %s0 = inlined_call_operand.vmem [shape: f32[2,4,8,32], index: 0, kind: input, shape index: {}]
  %s1 = inlined_call_operand.vmem [shape: bf16[2,4,128,32], index: 1, kind: input, shape index: {}]
  %s2 = inlined_call_operand.vmem [shape: bf16[2,4,128,33], index: 2, kind: input, shape index: {}]
  %s3 = inlined_call_operand.hbm [shape: f32[2,1,8,128], index: 3, kind: output, shape index: {}]
  %s4 = sld [smem:[#allocation0]]
  $region53: #{tpu_custom_call.1} parent=0
    _
  %s6 = ssub.s32 1, %s4
  %s7 = scalar_select 0, %s6, %s4
  $region1: #{tpu_custom_call.1} parent=0
    #allocation5 [shape = 'u8[8192]{0}', space=vmem, size = 0x2000, scoped, tag = 'output window, operand 0']
    #allocation6 [shape = 's32[2]{0}', space=sflag, size = 0x8, scoped, tag = 'scoped memory for tpu_custom_call.1']
    %8 = vsyncpa [#allocation6], 0
    %s9 = scalar_lea.sflag [#allocation6], 1
    %10 = vsyncpa %s9, 0
    loop: start=0, step=1, limit=4
    $region2: #{tpu_custom_call.1} parent=1 // loop_pre_header
      _
    $region3: #{tpu_custom_call.1} parent=1 // loop_header
      %s12 = sphi 0, %s16
      %p13 = scmp.ge.s32.totalorder %s12, 4
      %s19 = sphi 0, %s45
      %s20 = sphi 0, %s41
      %s21 = sphi 0, %s37
      %s22 = sphi 0, %s33
      %s23 = sphi 0, %s19
      %s24 = sphi 0, %s20
      %s25 = sphi 0, %s21
      %s26 = sphi 0, %s22
      %s27 = sphi 0, %s23
      %s28 = sphi 0, %s24
      %s29 = sphi 0, %s25
      %s30 = sphi 0, %s26
      %s52 = sphi 0, %s54
      %s55 = sphi 0, %s52
      %s56 = sphi 0, %s55
      %s72 = sphi 0, %s56
      %s82 = sphi 0, %s84
      %s85 = sphi 0, %s82
      %s86 = sphi 0, %s85
      %s102 = sphi 0, %s86
      %s112 = sphi 0, %s114
      %s115 = sphi 0, %s112
      %s116 = sphi 0, %s115
      %s132 = sphi 0, %s116
      %s142 = sphi 0, %s144
      %s145 = sphi 0, %s142
      %s146 = sphi 0, %s145
      %s162 = sphi 0, %s146
    $region4: #{tpu_custom_call.1} parent=1 // loop_header_branch
      %15 = sbr.rel (%p13) target = $region8
    $region5: #{tpu_custom_call.1} parent=1 // loop_body
      %s17 = ssub.s32 %s12, 1
      %s18 = ssub.s32 %s12, 2
      %s31 = sadd.s32 1, %s22
      %p32 = scmp.ge.s32.totalorder %s31, 1
      %s33 = scalar_select %p32, 0, %s31
      %s34 = sadd.s32 1, %s21
      %s35 = scalar_select %p32, %s34, %s21
      %p36 = scmp.ge.s32.totalorder %s35, 1
      %s37 = scalar_select %p36, 0, %s35
      %s38 = sadd.s32 1, %s20
      %s39 = scalar_select %p36, %s38, %s20
      %p40 = scmp.ge.s32.totalorder %s39, 1
      %s41 = scalar_select %p40, 0, %s39
      %s42 = sadd.s32 1, %s19
      %s43 = scalar_select %p40, %s42, %s19
      %p44 = scmp.ge.s32.totalorder %s43, 2
      %s45 = scalar_select %p44, 0, %s43
      %s46 = ssub.s32 %s19, %s45
      %s47 = ssub.s32 %s20, %s41
      %s48 = sor.u32 %s46, %s47
      %s49 = ssub.s32 %s21, %s37
      %s50 = sor.u32 %s48, %s49
      %p51 = scmp.eq.s32.totalorder %s50, 0
      %s53 = sadd.s32 %s52, 1
      %s54 = scalar_select %p51, %s52, %s53
      %p57 = pneg %p51
      %p58 = scmp.eq.s32.totalorder %s12, 1
      %p59 = por %p57, %p58
      %p60 = scmp.ne.s32.totalorder %s52, %s55
      %p61 = scmp.eq.s32.totalorder %s12, 0
      %p62 = por %p60, %p61
      %p63 = scmp.ne.s32.totalorder %s52, %s55
      %p64 = scmp.eq.s32.totalorder %s17, 1
      %p65 = por %p63, %p64
      %p66 = scmp.ne.s32.totalorder %s55, %s56
      %p67 = scmp.eq.s32.totalorder %s17, 0
      %p68 = por %p66, %p67
      %p69 = scmp.ne.s32.totalorder %s55, %s56
      %p70 = scmp.eq.s32.totalorder %s18, 1
      %p71 = por %p69, %p70
      %p73 = scmp.ne.s32.totalorder %s56, %s72
      %p74 = scmp.eq.s32.totalorder %s18, 0
      %p75 = por %p73, %p74
      %s76 = ssub.s32 %s19, %s45
      %s77 = ssub.s32 %s20, %s41
      %s78 = sor.u32 %s76, %s77
      %s79 = ssub.s32 %s22, %s33
      %s80 = sor.u32 %s78, %s79
      %p81 = scmp.eq.s32.totalorder %s80, 0
      %s83 = sadd.s32 %s82, 1
      %s84 = scalar_select %p81, %s82, %s83
      %p87 = pneg %p81
      %p88 = scmp.eq.s32.totalorder %s12, 1
      %p89 = por %p87, %p88
      %p90 = scmp.ne.s32.totalorder %s82, %s85
      %p91 = scmp.eq.s32.totalorder %s12, 0
      %p92 = por %p90, %p91
      %p93 = scmp.ne.s32.totalorder %s82, %s85
      %p94 = scmp.eq.s32.totalorder %s17, 1
      %p95 = por %p93, %p94
      %p96 = scmp.ne.s32.totalorder %s85, %s86
      %p97 = scmp.eq.s32.totalorder %s17, 0
      %p98 = por %p96, %p97
      %p99 = scmp.ne.s32.totalorder %s85, %s86
      %p100 = scmp.eq.s32.totalorder %s18, 1
      %p101 = por %p99, %p100
      %p103 = scmp.ne.s32.totalorder %s86, %s102
      %p104 = scmp.eq.s32.totalorder %s18, 0
      %p105 = por %p103, %p104
      %s106 = ssub.s32 %s19, %s45
      %s107 = ssub.s32 %s20, %s41
      %s108 = sor.u32 %s106, %s107
      %s109 = ssub.s32 %s22, %s33
      %s110 = sor.u32 %s108, %s109
      %p111 = scmp.eq.s32.totalorder %s110, 0
      %s113 = sadd.s32 %s112, 1
      %s114 = scalar_select %p111, %s112, %s113
      %p117 = pneg %p111
      %p118 = scmp.eq.s32.totalorder %s12, 1
      %p119 = por %p117, %p118
      %p120 = scmp.ne.s32.totalorder %s112, %s115
      %p121 = scmp.eq.s32.totalorder %s12, 0
      %p122 = por %p120, %p121
      %p123 = scmp.ne.s32.totalorder %s112, %s115
      %p124 = scmp.eq.s32.totalorder %s17, 1
      %p125 = por %p123, %p124
      %p126 = scmp.ne.s32.totalorder %s115, %s116
      %p127 = scmp.eq.s32.totalorder %s17, 0
      %p128 = por %p126, %p127
      %p129 = scmp.ne.s32.totalorder %s115, %s116
      %p130 = scmp.eq.s32.totalorder %s18, 1
      %p131 = por %p129, %p130
      %p133 = scmp.ne.s32.totalorder %s116, %s132
      %p134 = scmp.eq.s32.totalorder %s18, 0
      %p135 = por %p133, %p134
      %s136 = ssub.s32 %s19, %s45
      %s137 = ssub.s32 %s20, %s41
      %s138 = sor.u32 %s136, %s137
      %s139 = ssub.s32 %s21, %s37
      %s140 = sor.u32 %s138, %s139
      %p141 = scmp.eq.s32.totalorder %s140, 0
      %s143 = sadd.s32 %s142, 1
      %s144 = scalar_select %p141, %s142, %s143
      %p147 = pneg %p141
      %p148 = scmp.eq.s32.totalorder %s12, 1
      %p149 = por %p147, %p148
      %p150 = scmp.ne.s32.totalorder %s142, %s145
      %p151 = scmp.eq.s32.totalorder %s12, 0
      %p152 = por %p150, %p151
      %p153 = scmp.ne.s32.totalorder %s142, %s145
      %p154 = scmp.eq.s32.totalorder %s17, 1
      %p155 = por %p153, %p154
      %p156 = scmp.ne.s32.totalorder %s145, %s146
      %p157 = scmp.eq.s32.totalorder %s17, 0
      %p158 = por %p156, %p157
      %p159 = scmp.ne.s32.totalorder %s145, %s146
      %p160 = scmp.eq.s32.totalorder %s18, 1
      %p161 = por %p159, %p160
      %p163 = scmp.ne.s32.totalorder %s146, %s162
      %p164 = scmp.eq.s32.totalorder %s18, 0
      %p165 = por %p163, %p164
      %p166 = scmp.le.s32.totalorder 1, %s12
      %p167 = scmp.lt.s32.totalorder %s12, 3
      %p168 = pnand %p166, %p167
      %p169 = pneg %p168
      // Predicated region
      $region9: #{tpu_custom_call.1} parent=5 // pred_check
        _
      $region10: #{tpu_custom_call.1} parent=5 // pred_check_branch
        %171 = sbr.rel (%p168) target = $region12
      $region11: #{tpu_custom_call.1} parent=5 // pred_region
        %s172 = ssub.s32 %s12, 1
      $region12: #{tpu_custom_call.1} parent=5 // pred_fallthru
        _
      %p173 = scmp.lt.s32.totalorder %s12, 2
      // Predicated region
      $region13: #{tpu_custom_call.1} parent=5 // pred_check
        %p174 = pneg %p173
      $region14: #{tpu_custom_call.1} parent=5 // pred_check_branch
        %176 = sbr.rel (%p174) target = $region16
      $region15: #{tpu_custom_call.1} parent=5 // pred_region
        // Predicated region
        $region17: #{tpu_custom_call.1} parent=15 // pred_check
          %p177 = pneg %p62
        $region18: #{tpu_custom_call.1} parent=15 // pred_check_branch
          %179 = sbr.rel (%p177) target = $region20
        $region19: #{tpu_custom_call.1} parent=15 // pred_region
          %s180 = smul.u32 4, %s20
          %p181 = scmp.lt.s32.totalorder %s19, 1
          %s182 = scalar_select %p181, %s19, 1
          %p183 = scmp.lt.s32.totalorder %s180, 3
          %s184 = scalar_select %p183, %s180, 3
          %p185 = scmp.lt.s32.totalorder %s21, 0
          %s186 = scalar_select %p185, %s21, 0
          %s187 = sadd.s32 %s186, %s184
          %s188 = smul.addr %s182, 4
          %s189 = sadd.s32 %s187, %s188
          %s190 = smul.addr %s189, 8
          %s191 = scalar_lea.vmem %s0, %s190
          %s192 = smul.u32 4, %s20
        $region20: #{tpu_custom_call.1} parent=15 // pred_fallthru
          _
        // Predicated region
        $region21: #{tpu_custom_call.1} parent=15 // pred_check
          %p193 = pneg %p92
        $region22: #{tpu_custom_call.1} parent=15 // pred_check_branch
          %195 = sbr.rel (%p193) target = $region24
        $region23: #{tpu_custom_call.1} parent=15 // pred_region
          %s196 = smul.u32 4, %s20
          %s197 = smul.u32 16, %s22
          %p198 = scmp.lt.s32.totalorder %s19, 1
          %s199 = scalar_select %p198, %s19, 1
          %p200 = scmp.lt.s32.totalorder %s196, 3
          %s201 = scalar_select %p200, %s196, 3
          %p202 = scmp.lt.s32.totalorder %s197, 15
          %s203 = scalar_select %p202, %s197, 15
          %s204 = smul.addr %s201, 16
          %s205 = sadd.s32 %s203, %s204
          %s206 = smul.addr %s199, 64
          %s207 = sadd.s32 %s205, %s206
          %s208 = smul.addr %s207, 4
          %s209 = scalar_lea.vmem %s1, %s208
          %s210 = smul.u32 4, %s20
          %s211 = smul.u32 16, %s22
        $region24: #{tpu_custom_call.1} parent=15 // pred_fallthru
          _
        // Predicated region
        $region25: #{tpu_custom_call.1} parent=15 // pred_check
          %p212 = pneg %p122
        $region26: #{tpu_custom_call.1} parent=15 // pred_check_branch
          %214 = sbr.rel (%p212) target = $region28
        $region27: #{tpu_custom_call.1} parent=15 // pred_region
          %s215 = smul.u32 4, %s20
          %s216 = smul.u32 16, %s22
          %p217 = scmp.lt.s32.totalorder %s19, 1
          %s218 = scalar_select %p217, %s19, 1
          %p219 = scmp.lt.s32.totalorder %s215, 3
          %s220 = scalar_select %p219, %s215, 3
          %p221 = scmp.lt.s32.totalorder %s216, 15
          %s222 = scalar_select %p221, %s216, 15
          %s223 = smul.addr %s220, 16
          %s224 = sadd.s32 %s222, %s223
          %s225 = smul.addr %s218, 64
          %s226 = sadd.s32 %s224, %s225
          %s227 = smul.addr %s226, 4
          %s228 = scalar_lea.vmem %s2, %s227
          %s229 = smul.u32 4, %s20
          %s230 = smul.u32 16, %s22
        $region28: #{tpu_custom_call.1} parent=15 // pred_fallthru
          _
      $region16: #{tpu_custom_call.1} parent=5 // pred_fallthru
        _
      %p231 = scmp.le.s32.totalorder 1, %s12
      %p232 = scmp.lt.s32.totalorder %s12, 3
      %p233 = pnand %p231, %p232
      %p234 = pneg %p233
      // Predicated region
      $region29: #{tpu_custom_call.1} parent=5 // pred_check
        _
      $region30: #{tpu_custom_call.1} parent=5 // pred_check_branch
        %236 = sbr.rel (%p233) target = $region32
      $region31: #{tpu_custom_call.1} parent=5 // pred_region
        %s237 = ssub.s32 %s12, 1
        %s238 = smul.u32 4, %s24
        %p239 = scmp.lt.s32.totalorder %s23, 1
        %s240 = scalar_select %p239, %s23, 1
        %p241 = scmp.lt.s32.totalorder %s238, 3
        %s242 = scalar_select %p241, %s238, 3
        %p243 = scmp.lt.s32.totalorder %s25, 0
        %s244 = scalar_select %p243, %s25, 0
        %s245 = sadd.s32 %s244, %s242
        %s246 = smul.addr %s240, 4
        %s247 = sadd.s32 %s245, %s246
        %s248 = smul.addr %s247, 8
        %s249 = scalar_lea.vmem %s0, %s248
        %p250 = pneg %p68
        %p251 = pneg %p65
        %s252 = smul.u32 4, %s24
        %s253 = smul.u32 16, %s26
        %p254 = scmp.lt.s32.totalorder %s23, 1
        %s255 = scalar_select %p254, %s23, 1
        %p256 = scmp.lt.s32.totalorder %s252, 3
        %s257 = scalar_select %p256, %s252, 3
        %p258 = scmp.lt.s32.totalorder %s253, 15
        %s259 = scalar_select %p258, %s253, 15
        %s260 = smul.addr %s257, 16
        %s261 = sadd.s32 %s259, %s260
        %s262 = smul.addr %s255, 64
        %s263 = sadd.s32 %s261, %s262
        %s264 = smul.addr %s263, 4
        %s265 = scalar_lea.vmem %s1, %s264
        %p266 = pneg %p98
        %p267 = pneg %p95
        %s268 = smul.u32 4, %s24
        %s269 = smul.u32 16, %s26
        %p270 = scmp.lt.s32.totalorder %s23, 1
        %s271 = scalar_select %p270, %s23, 1
        %p272 = scmp.lt.s32.totalorder %s268, 3
        %s273 = scalar_select %p272, %s268, 3
        %p274 = scmp.lt.s32.totalorder %s269, 15
        %s275 = scalar_select %p274, %s269, 15
        %s276 = smul.addr %s273, 16
        %s277 = sadd.s32 %s275, %s276
        %s278 = smul.addr %s271, 64
        %s279 = sadd.s32 %s277, %s278
        %s280 = smul.addr %s279, 4
        %s281 = scalar_lea.vmem %s2, %s280
        %p282 = pneg %p128
        %p283 = pneg %p125
        %p284 = pneg %p158
        %p285 = pneg %p155
        %s286 = sand.u32 %s145, 1
        %s287 = scalar_lea.sflag [#allocation6], %s286
        %s288 = sand.u32 %s145, 1
        %s289 = smul.addr %s288, 8
        %s290 = scalar_lea.vmem [#allocation5], %s289
        %s291 = smul.u32 4, %s24
        %p292 = scmp.lt.s32.totalorder %s23, 1
        %s293 = scalar_select %p292, %s23, 1
        %p294 = scmp.lt.s32.totalorder %s291, 3
        %s295 = scalar_select %p294, %s291, 3
        %p296 = scmp.lt.s32.totalorder %s25, 0
        %s297 = scalar_select %p296, %s25, 0
        %s298 = sadd.s32 %s297, %s295
        %s299 = smul.addr %s293, 4
        %s300 = sadd.s32 %s298, %s299
        %s301 = smul.addr %s300, 8
        %s302 = scalar_lea.vmem %s0, %s301
        %s303 = smul.u32 4, %s24
        %s304 = smul.u32 4, %s24
        %s305 = smul.u32 16, %s26
        %p306 = scmp.lt.s32.totalorder %s23, 1
        %s307 = scalar_select %p306, %s23, 1
        %p308 = scmp.lt.s32.totalorder %s304, 3
        %s309 = scalar_select %p308, %s304, 3
        %p310 = scmp.lt.s32.totalorder %s305, 15
        %s311 = scalar_select %p310, %s305, 15
        %s312 = smul.addr %s309, 16
        %s313 = sadd.s32 %s311, %s312
        %s314 = smul.addr %s307, 64
        %s315 = sadd.s32 %s313, %s314
        %s316 = smul.addr %s315, 4
        %s317 = scalar_lea.vmem %s1, %s316
        %s318 = smul.u32 4, %s24
        %s319 = smul.u32 16, %s26
        %s320 = smul.u32 4, %s24
        %s321 = smul.u32 16, %s26
        %p322 = scmp.lt.s32.totalorder %s23, 1
        %s323 = scalar_select %p322, %s23, 1
        %p324 = scmp.lt.s32.totalorder %s320, 3
        %s325 = scalar_select %p324, %s320, 3
        %p326 = scmp.lt.s32.totalorder %s321, 15
        %s327 = scalar_select %p326, %s321, 15
        %s328 = smul.addr %s325, 16
        %s329 = sadd.s32 %s327, %s328
        %s330 = smul.addr %s323, 64
        %s331 = sadd.s32 %s329, %s330
        %s332 = smul.addr %s331, 4
        %s333 = scalar_lea.vmem %s2, %s332
        %s334 = smul.u32 4, %s24
        %s335 = smul.u32 16, %s26
        %p337 = scmp.eq.s32.totalorder %s26, 0
        // Predicated region
        $region33: #{tpu_custom_call.1} parent=31 // pred_check
          %p338 = pneg %p337
        $region34: #{tpu_custom_call.1} parent=31 // pred_check_branch
          %340 = sbr.rel (%p338) target = $region36
        $region35: #{tpu_custom_call.1} parent=31 // pred_region
          %v341 = vld [vmem:[%s302] sm:$0xff]
          %v342 = vld [vmem:[%s302 + $0x8] sm:$0xff]
          %v343 = vld [vmem:[%s302 + $0x10] sm:$0xff]
          %v344 = vld [vmem:[%s302 + $0x18] sm:$0xff]
          %v345 = vmul.f32 %v341, 0.17677669
          %v346 = vmul.f32 %v342, 0.17677669
          %v347 = vmul.f32 %v343, 0.17677669
          %v348 = vmul.f32 %v344, 0.17677669
          %v349 = vpack.c.bf16 %v345, %v345
          %v350 = vpack.c.bf16 %v346, %v346
          %v351 = vpack.c.bf16 %v347, %v347
          %v352 = vpack.c.bf16 %v348, %v348
          %vm353 = vcmask 257024
          %354 = vst.msk [vmem:[#allocation2] sm:$0xf] %vm353, %v349
          %355 = vst.msk [vmem:[#allocation2 + $0x4] sm:$0xf] %vm353, %v350
          %356 = vst.msk [vmem:[#allocation2 + $0x8] sm:$0xf] %vm353, %v351
          %357 = vst.msk [vmem:[#allocation2 + $0xc] sm:$0xf] %vm353, %v352
          %358 = vst [vmem:[#allocation3] sm:$0xff] -inf
          %359 = vst [vmem:[#allocation3 + $0x8] sm:$0xff] -inf
          %360 = vst [vmem:[#allocation3 + $0x10] sm:$0xff] -inf
          %361 = vst [vmem:[#allocation3 + $0x18] sm:$0xff] -inf
          %vm362 = vcmask 269312
          %363 = vst.msk [vmem:[#allocation4] sm:$0xff] %vm362, 0.0
          %364 = vst.msk [vmem:[#allocation4 + $0x8] sm:$0xff] %vm362, 0.0
          %365 = vst.msk [vmem:[#allocation4 + $0x10] sm:$0xff] %vm362, 0.0
          %366 = vst.msk [vmem:[#allocation4 + $0x18] sm:$0xff] %vm362, 0.0
        $region36: #{tpu_custom_call.1} parent=31 // pred_fallthru
          _
        %v367 = vld [vmem:[#allocation2] sm:$0xf]
        %v368 = vld [vmem:[#allocation2 + $0x4] sm:$0xf]
        %v369 = vld [vmem:[#allocation2 + $0x8] sm:$0xf]
        %v370 = vld [vmem:[#allocation2 + $0xc] sm:$0xf]
        %v371 = vld [vmem:[%s317] sm:$0xf]
        %v372 = vld [vmem:[%s317 + $0x4] sm:$0xf]
        %v373 = vld [vmem:[%s317 + $0x8] sm:$0xf]
        %v374 = vld [vmem:[%s317 + $0xc] sm:$0xf]
        %v375 = vld [vmem:[%s317 + $0x10] sm:$0xf]
        %v376 = vld [vmem:[%s317 + $0x14] sm:$0xf]
        %v377 = vld [vmem:[%s317 + $0x18] sm:$0xf]
        %v378 = vld [vmem:[%s317 + $0x1c] sm:$0xf]
        %v379 = vld [vmem:[%s317 + $0x20] sm:$0xf]
        %v380 = vld [vmem:[%s317 + $0x24] sm:$0xf]
        %v381 = vld [vmem:[%s317 + $0x28] sm:$0xf]
        %v382 = vld [vmem:[%s317 + $0x2c] sm:$0xf]
        %v383 = vld [vmem:[%s317 + $0x30] sm:$0xf]
        %v384 = vld [vmem:[%s317 + $0x34] sm:$0xf]
        %v385 = vld [vmem:[%s317 + $0x38] sm:$0xf]
        %v386 = vld [vmem:[%s317 + $0x3c] sm:$0xf]
        %v387 = vld [vmem:[%s317 + $0x40] sm:$0xf]
        %v388 = vld [vmem:[%s317 + $0x44] sm:$0xf]
        %v389 = vld [vmem:[%s317 + $0x48] sm:$0xf]
        %v390 = vld [vmem:[%s317 + $0x4c] sm:$0xf]
        %v391 = vld [vmem:[%s317 + $0x50] sm:$0xf]
        %v392 = vld [vmem:[%s317 + $0x54] sm:$0xf]
        %v393 = vld [vmem:[%s317 + $0x58] sm:$0xf]
        %v394 = vld [vmem:[%s317 + $0x5c] sm:$0xf]
        %v395 = vld [vmem:[%s317 + $0x60] sm:$0xf]
        %v396 = vld [vmem:[%s317 + $0x64] sm:$0xf]
        %v397 = vld [vmem:[%s317 + $0x68] sm:$0xf]
        %v398 = vld [vmem:[%s317 + $0x6c] sm:$0xf]
        %v399 = vld [vmem:[%s317 + $0x70] sm:$0xf]
        %v400 = vld [vmem:[%s317 + $0x74] sm:$0xf]
        %v401 = vld [vmem:[%s317 + $0x78] sm:$0xf]
        %v402 = vld [vmem:[%s317 + $0x7c] sm:$0xf]
        %v403 = vld [vmem:[%s317 + $0x80] sm:$0xf]
        %v404 = vld [vmem:[%s317 + $0x84] sm:$0xf]
        %v405 = vld [vmem:[%s317 + $0x88] sm:$0xf]
        %v406 = vld [vmem:[%s317 + $0x8c] sm:$0xf]
        %v407 = vld [vmem:[%s317 + $0x90] sm:$0xf]
        %v408 = vld [vmem:[%s317 + $0x94] sm:$0xf]
        %v409 = vld [vmem:[%s317 + $0x98] sm:$0xf]
        %v410 = vld [vmem:[%s317 + $0x9c] sm:$0xf]
        %v411 = vld [vmem:[%s317 + $0xa0] sm:$0xf]
        %v412 = vld [vmem:[%s317 + $0xa4] sm:$0xf]
        %v413 = vld [vmem:[%s317 + $0xa8] sm:$0xf]
        %v414 = vld [vmem:[%s317 + $0xac] sm:$0xf]
        %v415 = vld [vmem:[%s317 + $0xb0] sm:$0xf]
        %v416 = vld [vmem:[%s317 + $0xb4] sm:$0xf]
        %v417 = vld [vmem:[%s317 + $0xb8] sm:$0xf]
        %v418 = vld [vmem:[%s317 + $0xbc] sm:$0xf]
        %v419 = vld [vmem:[%s317 + $0xc0] sm:$0xf]
        %v420 = vld [vmem:[%s317 + $0xc4] sm:$0xf]
        %v421 = vld [vmem:[%s317 + $0xc8] sm:$0xf]
        %v422 = vld [vmem:[%s317 + $0xcc] sm:$0xf]
        %v423 = vld [vmem:[%s317 + $0xd0] sm:$0xf]
        %v424 = vld [vmem:[%s317 + $0xd4] sm:$0xf]
        %v425 = vld [vmem:[%s317 + $0xd8] sm:$0xf]
        %v426 = vld [vmem:[%s317 + $0xdc] sm:$0xf]
        %v427 = vld [vmem:[%s317 + $0xe0] sm:$0xf]
        %v428 = vld [vmem:[%s317 + $0xe4] sm:$0xf]
        %v429 = vld [vmem:[%s317 + $0xe8] sm:$0xf]
        %v430 = vld [vmem:[%s317 + $0xec] sm:$0xf]
        %v431 = vld [vmem:[%s317 + $0xf0] sm:$0xf]
        %v432 = vld [vmem:[%s317 + $0xf4] sm:$0xf]
        %v433 = vld [vmem:[%s317 + $0xf8] sm:$0xf]
        %v434 = vld [vmem:[%s317 + $0xfc] sm:$0xf]
        %v451 = vunpack.c.l.b16 %v371
        %v452 = vunpack.c.l.b16 %v372
        %v453 = vunpack.c.l.b16 %v373
        %v454 = vunpack.c.l.b16 %v374
        %v455 = vunpack.c.l.b16 %v375
        %v456 = vunpack.c.l.b16 %v376
        %v457 = vunpack.c.l.b16 %v377
        %v458 = vunpack.c.l.b16 %v378
        %v459 = vunpack.c.l.b16 %v379
        %v460 = vunpack.c.l.b16 %v380
        %v461 = vunpack.c.l.b16 %v381
        %v462 = vunpack.c.l.b16 %v382
        %v463 = vunpack.c.l.b16 %v383
        %v464 = vunpack.c.l.b16 %v384
        %v465 = vunpack.c.l.b16 %v385
        %v466 = vunpack.c.l.b16 %v386
        %v467 = vpack.c.b16 %v452, %v451
        %v468 = vpack.c.b16 %v454, %v453
        %v469 = vpack.c.b16 %v456, %v455
        %v470 = vpack.c.b16 %v458, %v457
        %v471 = vpack.c.b16 %v460, %v459
        %v472 = vpack.c.b16 %v462, %v461
        %v473 = vpack.c.b16 %v464, %v463
        %v474 = vpack.c.b16 %v466, %v465
        %vm475 = vcmask 261120
        %v477 = vsel %vm475, %v367, 0
        %v480 = vsel %vm475, %v467, 0
        %v483 = vsel %vm475, %v468, 0
        %v486 = vsel %vm475, %v469, 0
        %v489 = vsel %vm475, %v470, 0
        %v492 = vsel %vm475, %v471, 0
        %v495 = vsel %vm475, %v472, 0
        %v498 = vsel %vm475, %v473, 0
        %v501 = vsel %vm475, %v474, 0
        %503 = vmatprep.subr.bf16.mxu0 0
        %504 = vmatpush1.bf16.xpose.msra.mxu0 %v480
        %505 = vmatprep.subr.bf16.mxu0 0
        %506 = vmatpush1.bf16.xpose.msra.mxu0 %v483
        %507 = vmatprep.subr.bf16.mxu0 0
        %508 = vmatpush1.bf16.xpose.msra.mxu0 %v486
        %509 = vmatprep.subr.bf16.mxu0 0
        %510 = vmatpush1.bf16.xpose.msra.mxu0 %v489
        %511 = vmatprep.subr.bf16.mxu0 0
        %512 = vmatpush1.bf16.xpose.msra.mxu0 %v492
        %513 = vmatprep.subr.bf16.mxu0 0
        %514 = vmatpush1.bf16.xpose.msra.mxu0 %v495
        %515 = vmatprep.subr.bf16.mxu0 0
        %516 = vmatpush1.bf16.xpose.msra.mxu0 %v498
        %517 = vmatprep.subr.bf16.mxu0 0
        %518 = vmatpush1.bf16.xpose.msra.mxu0 %v501
        %519 = vmatprep.subr.bf16.mxu0 0
        %520 = vmatpush1.bf16.xpose.msra.mxu0 0
        %521 = vmatprep.subr.bf16.mxu0 0
        %522 = vmatpush1.bf16.xpose.msra.mxu0 0
        %523 = vmatprep.subr.bf16.mxu0 0
        %524 = vmatpush1.bf16.xpose.msra.mxu0 0
        %525 = vmatprep.subr.bf16.mxu0 0
        %526 = vmatpush1.bf16.xpose.msra.mxu0 0
        %527 = vmatprep.subr.bf16.mxu0 0
        %528 = vmatpush1.bf16.xpose.msra.mxu0 0
        %529 = vmatprep.subr.bf16.mxu0 0
        %530 = vmatpush1.bf16.xpose.msra.mxu0 0
        %531 = vmatprep.subr.bf16.mxu0 0
        %532 = vmatpush1.bf16.xpose.msra.mxu0 0
        %533 = vmatprep.subr.bf16.mxu0 0
        %534 = vmatpush1.bf16.xpose.msra.mxu0 0
        %535 = vmatprep.mubr.bf16.mxu0 0
        %536 = vmatmul.mubr.bf16.gmra.mrb[0].mxu0 %v477
        %v537 = vpop.f32.mrb[0].mxu0
        %v538 = vadd.f32 0.0, %v537
        %v539 = vpop.f32.mrb[0].mxu0
        %v540 = vpop.f32.mrb[0].mxu0
        %v541 = vpop.f32.mrb[0].mxu0
        %542 = vdwg.mxu0
        %v559 = vunpack.c.l.b16 %v387
        %v560 = vunpack.c.l.b16 %v388
        %v561 = vunpack.c.l.b16 %v389
        %v562 = vunpack.c.l.b16 %v390
        %v563 = vunpack.c.l.b16 %v391
        %v564 = vunpack.c.l.b16 %v392
        %v565 = vunpack.c.l.b16 %v393
        %v566 = vunpack.c.l.b16 %v394
        %v567 = vunpack.c.l.b16 %v395
        %v568 = vunpack.c.l.b16 %v396
        %v569 = vunpack.c.l.b16 %v397
        %v570 = vunpack.c.l.b16 %v398
        %v571 = vunpack.c.l.b16 %v399
        %v572 = vunpack.c.l.b16 %v400
        %v573 = vunpack.c.l.b16 %v401
        %v574 = vunpack.c.l.b16 %v402
        %v575 = vpack.c.b16 %v560, %v559
        %v576 = vpack.c.b16 %v562, %v561
        %v577 = vpack.c.b16 %v564, %v563
        %v578 = vpack.c.b16 %v566, %v565
        %v579 = vpack.c.b16 %v568, %v567
        %v580 = vpack.c.b16 %v570, %v569
        %v581 = vpack.c.b16 %v572, %v571
        %v582 = vpack.c.b16 %v574, %v573
        %v584 = vsel %vm475, %v368, 0
        %v587 = vsel %vm475, %v575, 0
        %v590 = vsel %vm475, %v576, 0
        %v593 = vsel %vm475, %v577, 0
        %v596 = vsel %vm475, %v578, 0
        %v599 = vsel %vm475, %v579, 0
        %v602 = vsel %vm475, %v580, 0
        %v605 = vsel %vm475, %v581, 0
        %v608 = vsel %vm475, %v582, 0
        %610 = vmatprep.subr.bf16.mxu0 0
        %611 = vmatpush1.bf16.xpose.msra.mxu0 %v587
        %612 = vmatprep.subr.bf16.mxu0 0
        %613 = vmatpush1.bf16.xpose.msra.mxu0 %v590
        %614 = vmatprep.subr.bf16.mxu0 0
        %615 = vmatpush1.bf16.xpose.msra.mxu0 %v593
        %616 = vmatprep.subr.bf16.mxu0 0
        %617 = vmatpush1.bf16.xpose.msra.mxu0 %v596
        %618 = vmatprep.subr.bf16.mxu0 0
        %619 = vmatpush1.bf16.xpose.msra.mxu0 %v599
        %620 = vmatprep.subr.bf16.mxu0 0
        %621 = vmatpush1.bf16.xpose.msra.mxu0 %v602
        %622 = vmatprep.subr.bf16.mxu0 0
        %623 = vmatpush1.bf16.xpose.msra.mxu0 %v605
        %624 = vmatprep.subr.bf16.mxu0 0
        %625 = vmatpush1.bf16.xpose.msra.mxu0 %v608
        %626 = vmatprep.subr.bf16.mxu0 0
        %627 = vmatpush1.bf16.xpose.msra.mxu0 0
        %628 = vmatprep.subr.bf16.mxu0 0
        %629 = vmatpush1.bf16.xpose.msra.mxu0 0
        %630 = vmatprep.subr.bf16.mxu0 0
        %631 = vmatpush1.bf16.xpose.msra.mxu0 0
        %632 = vmatprep.subr.bf16.mxu0 0
        %633 = vmatpush1.bf16.xpose.msra.mxu0 0
        %634 = vmatprep.subr.bf16.mxu0 0
        %635 = vmatpush1.bf16.xpose.msra.mxu0 0
        %636 = vmatprep.subr.bf16.mxu0 0
        %637 = vmatpush1.bf16.xpose.msra.mxu0 0
        %638 = vmatprep.subr.bf16.mxu0 0
        %639 = vmatpush1.bf16.xpose.msra.mxu0 0
        %640 = vmatprep.subr.bf16.mxu0 0
        %641 = vmatpush1.bf16.xpose.msra.mxu0 0
        %642 = vmatprep.mubr.bf16.mxu0 0
        %643 = vmatmul.mubr.bf16.gmra.mrb[0].mxu0 %v584
        %v644 = vpop.f32.mrb[0].mxu0
        %v645 = vadd.f32 0.0, %v644
        %v646 = vpop.f32.mrb[0].mxu0
        %v647 = vpop.f32.mrb[0].mxu0
        %v648 = vpop.f32.mrb[0].mxu0
        %649 = vdwg.mxu0
        %v666 = vunpack.c.l.b16 %v403
        %v667 = vunpack.c.l.b16 %v404
        %v668 = vunpack.c.l.b16 %v405
        %v669 = vunpack.c.l.b16 %v406
        %v670 = vunpack.c.l.b16 %v407
        %v671 = vunpack.c.l.b16 %v408
        %v672 = vunpack.c.l.b16 %v409
        %v673 = vunpack.c.l.b16 %v410
        %v674 = vunpack.c.l.b16 %v411
        %v675 = vunpack.c.l.b16 %v412
        %v676 = vunpack.c.l.b16 %v413
        %v677 = vunpack.c.l.b16 %v414
        %v678 = vunpack.c.l.b16 %v415
        %v679 = vunpack.c.l.b16 %v416
        %v680 = vunpack.c.l.b16 %v417
        %v681 = vunpack.c.l.b16 %v418
        %v682 = vpack.c.b16 %v667, %v666
        %v683 = vpack.c.b16 %v669, %v668
        %v684 = vpack.c.b16 %v671, %v670
        %v685 = vpack.c.b16 %v673, %v672
        %v686 = vpack.c.b16 %v675, %v674
        %v687 = vpack.c.b16 %v677, %v676
        %v688 = vpack.c.b16 %v679, %v678
        %v689 = vpack.c.b16 %v681, %v680
        %v691 = vsel %vm475, %v369, 0
        %v694 = vsel %vm475, %v682, 0
        %v697 = vsel %vm475, %v683, 0
        %v700 = vsel %vm475, %v684, 0
        %v703 = vsel %vm475, %v685, 0
        %v706 = vsel %vm475, %v686, 0
        %v709 = vsel %vm475, %v687, 0
        %v712 = vsel %vm475, %v688, 0
        %v715 = vsel %vm475, %v689, 0
        %717 = vmatprep.subr.bf16.mxu0 0
        %718 = vmatpush1.bf16.xpose.msra.mxu0 %v694
        %719 = vmatprep.subr.bf16.mxu0 0
        %720 = vmatpush1.bf16.xpose.msra.mxu0 %v697
        %721 = vmatprep.subr.bf16.mxu0 0
        %722 = vmatpush1.bf16.xpose.msra.mxu0 %v700
        %723 = vmatprep.subr.bf16.mxu0 0
        %724 = vmatpush1.bf16.xpose.msra.mxu0 %v703
        %725 = vmatprep.subr.bf16.mxu0 0
        %726 = vmatpush1.bf16.xpose.msra.mxu0 %v706
        %727 = vmatprep.subr.bf16.mxu0 0
        %728 = vmatpush1.bf16.xpose.msra.mxu0 %v709
        %729 = vmatprep.subr.bf16.mxu0 0
        %730 = vmatpush1.bf16.xpose.msra.mxu0 %v712
        %731 = vmatprep.subr.bf16.mxu0 0
        %732 = vmatpush1.bf16.xpose.msra.mxu0 %v715
        %733 = vmatprep.subr.bf16.mxu0 0
        %734 = vmatpush1.bf16.xpose.msra.mxu0 0
        %735 = vmatprep.subr.bf16.mxu0 0
        %736 = vmatpush1.bf16.xpose.msra.mxu0 0
        %737 = vmatprep.subr.bf16.mxu0 0
        %738 = vmatpush1.bf16.xpose.msra.mxu0 0
        %739 = vmatprep.subr.bf16.mxu0 0
        %740 = vmatpush1.bf16.xpose.msra.mxu0 0
        %741 = vmatprep.subr.bf16.mxu0 0
        %742 = vmatpush1.bf16.xpose.msra.mxu0 0
        %743 = vmatprep.subr.bf16.mxu0 0
        %744 = vmatpush1.bf16.xpose.msra.mxu0 0
        %745 = vmatprep.subr.bf16.mxu0 0
        %746 = vmatpush1.bf16.xpose.msra.mxu0 0
        %747 = vmatprep.subr.bf16.mxu0 0
        %748 = vmatpush1.bf16.xpose.msra.mxu0 0
        %749 = vmatprep.mubr.bf16.mxu0 0
        %750 = vmatmul.mubr.bf16.gmra.mrb[0].mxu0 %v691
        %v751 = vpop.f32.mrb[0].mxu0
        %v752 = vadd.f32 0.0, %v751
        %v753 = vpop.f32.mrb[0].mxu0
        %v754 = vpop.f32.mrb[0].mxu0
        %v755 = vpop.f32.mrb[0].mxu0
        %756 = vdwg.mxu0
        %v773 = vunpack.c.l.b16 %v419
        %v774 = vunpack.c.l.b16 %v420
        %v775 = vunpack.c.l.b16 %v421
        %v776 = vunpack.c.l.b16 %v422
        %v777 = vunpack.c.l.b16 %v423
        %v778 = vunpack.c.l.b16 %v424
        %v779 = vunpack.c.l.b16 %v425
        %v780 = vunpack.c.l.b16 %v426
        %v781 = vunpack.c.l.b16 %v427
        %v782 = vunpack.c.l.b16 %v428
        %v783 = vunpack.c.l.b16 %v429
        %v784 = vunpack.c.l.b16 %v430
        %v785 = vunpack.c.l.b16 %v431
        %v786 = vunpack.c.l.b16 %v432
        %v787 = vunpack.c.l.b16 %v433
        %v788 = vunpack.c.l.b16 %v434
        %v789 = vpack.c.b16 %v774, %v773
        %v790 = vpack.c.b16 %v776, %v775
        %v791 = vpack.c.b16 %v778, %v777
        %v792 = vpack.c.b16 %v780, %v779
        %v793 = vpack.c.b16 %v782, %v781
        %v794 = vpack.c.b16 %v784, %v783
        %v795 = vpack.c.b16 %v786, %v785
        %v796 = vpack.c.b16 %v788, %v787
        %v798 = vsel %vm475, %v370, 0
        %v801 = vsel %vm475, %v789, 0
        %v804 = vsel %vm475, %v790, 0
        %v807 = vsel %vm475, %v791, 0
        %v810 = vsel %vm475, %v792, 0
        %v813 = vsel %vm475, %v793, 0
        %v816 = vsel %vm475, %v794, 0
        %v819 = vsel %vm475, %v795, 0
        %v822 = vsel %vm475, %v796, 0
        %824 = vmatprep.subr.bf16.mxu0 0
        %825 = vmatpush1.bf16.xpose.msra.mxu0 %v801
        %826 = vmatprep.subr.bf16.mxu0 0
        %827 = vmatpush1.bf16.xpose.msra.mxu0 %v804
        %828 = vmatprep.subr.bf16.mxu0 0
        %829 = vmatpush1.bf16.xpose.msra.mxu0 %v807
        %830 = vmatprep.subr.bf16.mxu0 0
        %831 = vmatpush1.bf16.xpose.msra.mxu0 %v810
        %832 = vmatprep.subr.bf16.mxu0 0
        %833 = vmatpush1.bf16.xpose.msra.mxu0 %v813
        %834 = vmatprep.subr.bf16.mxu0 0
        %835 = vmatpush1.bf16.xpose.msra.mxu0 %v816
        %836 = vmatprep.subr.bf16.mxu0 0
        %837 = vmatpush1.bf16.xpose.msra.mxu0 %v819
        %838 = vmatprep.subr.bf16.mxu0 0
        %839 = vmatpush1.bf16.xpose.msra.mxu0 %v822
        %840 = vmatprep.subr.bf16.mxu0 0
        %841 = vmatpush1.bf16.xpose.msra.mxu0 0
        %842 = vmatprep.subr.bf16.mxu0 0
        %843 = vmatpush1.bf16.xpose.msra.mxu0 0
        %844 = vmatprep.subr.bf16.mxu0 0
        %845 = vmatpush1.bf16.xpose.msra.mxu0 0
        %846 = vmatprep.subr.bf16.mxu0 0
        %847 = vmatpush1.bf16.xpose.msra.mxu0 0
        %848 = vmatprep.subr.bf16.mxu0 0
        %849 = vmatpush1.bf16.xpose.msra.mxu0 0
        %850 = vmatprep.subr.bf16.mxu0 0
        %851 = vmatpush1.bf16.xpose.msra.mxu0 0
        %852 = vmatprep.subr.bf16.mxu0 0
        %853 = vmatpush1.bf16.xpose.msra.mxu0 0
        %854 = vmatprep.subr.bf16.mxu0 0
        %855 = vmatpush1.bf16.xpose.msra.mxu0 0
        %856 = vmatprep.mubr.bf16.mxu0 0
        %857 = vmatmul.mubr.bf16.gmra.mrb[0].mxu0 %v798
        %v858 = vpop.f32.mrb[0].mxu0
        %v859 = vadd.f32 0.0, %v858
        %v860 = vpop.f32.mrb[0].mxu0
        %v861 = vpop.f32.mrb[0].mxu0
        %v862 = vpop.f32.mrb[0].mxu0
        %863 = vdwg.mxu0
        %s864 = smul.u32 %s26, 128
        %v865 = vlaneseq
        %v866 = vand.u32 %v865, 127
        %v867 = vstv %s864
        %v868 = vadd.s32 %v867, %v866
        %vm869 = vcmp.lt.s32.totalorder %v868, 8
        %v870 = vsel %vm869, 1, 0
        %vm871 = vcmp.eq.s32.totalorder %v870, 1
        %v872 = vsel %vm871, %v538, -1e+30
        %v873 = vsel %vm871, %v645, -1e+30
        %v874 = vsel %vm871, %v752, -1e+30
        %v875 = vsel %vm871, %v859, -1e+30
        %v876 = vld [vmem:[#allocation3] sm:$0xff]
        %v877 = vld [vmem:[#allocation3 + $0x8] sm:$0xff]
        %v878 = vld [vmem:[#allocation3 + $0x10] sm:$0xff]
        %v879 = vld [vmem:[#allocation3 + $0x18] sm:$0xff]
        %880 = vmax.xlane.f32.xlu0 %v872
        %v881 = vpop.xlane.xlu0 %880
        %882 = vmax.xlane.f32.xlu0 %v873
        %v883 = vpop.xlane.xlu0 %882
        %884 = vmax.xlane.f32.xlu0 %v874
        %v885 = vpop.xlane.xlu0 %884
        %886 = vmax.xlane.f32.xlu0 %v875
        %v887 = vpop.xlane.xlu0 %886
        %v888 = vmax.f32 %v876, %v881
        %v889 = vmax.f32 %v877, %v883
        %v890 = vmax.f32 %v878, %v885
        %v891 = vmax.f32 %v879, %v887
        %v892 = vsub.f32 %v876, %v888
        %v893 = vsub.f32 %v877, %v889
        %v894 = vsub.f32 %v878, %v890
        %v895 = vsub.f32 %v879, %v891
        %v896 = vmul.f32 %v892, 1.442695
        %v897 = vpow.pop %v896
        %v898 = vmul.f32 %v893, 1.442695
        %v899 = vpow.pop %v898
        %v900 = vmul.f32 %v894, 1.442695
        %v901 = vpow.pop %v900
        %v902 = vmul.f32 %v895, 1.442695
        %v903 = vpow.pop %v902
        %905 = vset.pattern.permute.xlu0 0
        %906 = vperm.xlu0 %905, %v888
        %v907 = vpop.permute.xlu0 %906
        %910 = vset.pattern.permute.xlu0 0
        %911 = vperm.xlu0 %910, %v889
        %v912 = vpop.permute.xlu0 %911
        %915 = vset.pattern.permute.xlu0 0
        %916 = vperm.xlu0 %915, %v890
        %v917 = vpop.permute.xlu0 %916
        %920 = vset.pattern.permute.xlu0 0
        %921 = vperm.xlu0 %920, %v891
        %v922 = vpop.permute.xlu0 %921
        %v924 = vsub.f32 %v872, %v907
        %v925 = vsub.f32 %v873, %v912
        %v926 = vsub.f32 %v874, %v917
        %v927 = vsub.f32 %v875, %v922
        %v928 = vmul.f32 %v924, 1.442695
        %v929 = vpow.pop %v928
        %v930 = vmul.f32 %v925, 1.442695
        %v931 = vpow.pop %v930
        %v932 = vmul.f32 %v926, 1.442695
        %v933 = vpow.pop %v932
        %v934 = vmul.f32 %v927, 1.442695
        %v935 = vpow.pop %v934
        %v936 = vpack.c.bf16 %v929, %v929
        %v937 = vpack.c.bf16 %v931, %v931
        %v938 = vpack.c.bf16 %v933, %v933
        %v939 = vpack.c.bf16 %v935, %v935
        %v940 = vld [vmem:[%s333] sm:$0xf]
        %v941 = vld [vmem:[%s333 + $0x4] sm:$0xf]
        %v942 = vld [vmem:[%s333 + $0x8] sm:$0xf]
        %v943 = vld [vmem:[%s333 + $0xc] sm:$0xf]
        %v944 = vld [vmem:[%s333 + $0x10] sm:$0xf]
        %v945 = vld [vmem:[%s333 + $0x14] sm:$0xf]
        %v946 = vld [vmem:[%s333 + $0x18] sm:$0xf]
        %v947 = vld [vmem:[%s333 + $0x1c] sm:$0xf]
        %v948 = vld [vmem:[%s333 + $0x20] sm:$0xf]
        %v949 = vld [vmem:[%s333 + $0x24] sm:$0xf]
        %v950 = vld [vmem:[%s333 + $0x28] sm:$0xf]
        %v951 = vld [vmem:[%s333 + $0x2c] sm:$0xf]
        %v952 = vld [vmem:[%s333 + $0x30] sm:$0xf]
        %v953 = vld [vmem:[%s333 + $0x34] sm:$0xf]
        %v954 = vld [vmem:[%s333 + $0x38] sm:$0xf]
        %v955 = vld [vmem:[%s333 + $0x3c] sm:$0xf]
        %v956 = vld [vmem:[%s333 + $0x40] sm:$0xf]
        %v957 = vld [vmem:[%s333 + $0x44] sm:$0xf]
        %v958 = vld [vmem:[%s333 + $0x48] sm:$0xf]
        %v959 = vld [vmem:[%s333 + $0x4c] sm:$0xf]
        %v960 = vld [vmem:[%s333 + $0x50] sm:$0xf]
        %v961 = vld [vmem:[%s333 + $0x54] sm:$0xf]
        %v962 = vld [vmem:[%s333 + $0x58] sm:$0xf]
        %v963 = vld [vmem:[%s333 + $0x5c] sm:$0xf]
        %v964 = vld [vmem:[%s333 + $0x60] sm:$0xf]
        %v965 = vld [vmem:[%s333 + $0x64] sm:$0xf]
        %v966 = vld [vmem:[%s333 + $0x68] sm:$0xf]
        %v967 = vld [vmem:[%s333 + $0x6c] sm:$0xf]
        %v968 = vld [vmem:[%s333 + $0x70] sm:$0xf]
        %v969 = vld [vmem:[%s333 + $0x74] sm:$0xf]
        %v970 = vld [vmem:[%s333 + $0x78] sm:$0xf]
        %v971 = vld [vmem:[%s333 + $0x7c] sm:$0xf]
        %v972 = vld [vmem:[%s333 + $0x80] sm:$0xf]
        %v973 = vld [vmem:[%s333 + $0x84] sm:$0xf]
        %v974 = vld [vmem:[%s333 + $0x88] sm:$0xf]
        %v975 = vld [vmem:[%s333 + $0x8c] sm:$0xf]
        %v976 = vld [vmem:[%s333 + $0x90] sm:$0xf]
        %v977 = vld [vmem:[%s333 + $0x94] sm:$0xf]
        %v978 = vld [vmem:[%s333 + $0x98] sm:$0xf]
        %v979 = vld [vmem:[%s333 + $0x9c] sm:$0xf]
        %v980 = vld [vmem:[%s333 + $0xa0] sm:$0xf]
        %v981 = vld [vmem:[%s333 + $0xa4] sm:$0xf]
        %v982 = vld [vmem:[%s333 + $0xa8] sm:$0xf]
        %v983 = vld [vmem:[%s333 + $0xac] sm:$0xf]
        %v984 = vld [vmem:[%s333 + $0xb0] sm:$0xf]
        %v985 = vld [vmem:[%s333 + $0xb4] sm:$0xf]
        %v986 = vld [vmem:[%s333 + $0xb8] sm:$0xf]
        %v987 = vld [vmem:[%s333 + $0xbc] sm:$0xf]
        %v988 = vld [vmem:[%s333 + $0xc0] sm:$0xf]
        %v989 = vld [vmem:[%s333 + $0xc4] sm:$0xf]
        %v990 = vld [vmem:[%s333 + $0xc8] sm:$0xf]
        %v991 = vld [vmem:[%s333 + $0xcc] sm:$0xf]
        %v992 = vld [vmem:[%s333 + $0xd0] sm:$0xf]
        %v993 = vld [vmem:[%s333 + $0xd4] sm:$0xf]
        %v994 = vld [vmem:[%s333 + $0xd8] sm:$0xf]
        %v995 = vld [vmem:[%s333 + $0xdc] sm:$0xf]
        %v996 = vld [vmem:[%s333 + $0xe0] sm:$0xf]
        %v997 = vld [vmem:[%s333 + $0xe4] sm:$0xf]
        %v998 = vld [vmem:[%s333 + $0xe8] sm:$0xf]
        %v999 = vld [vmem:[%s333 + $0xec] sm:$0xf]
        %v1000 = vld [vmem:[%s333 + $0xf0] sm:$0xf]
        %v1001 = vld [vmem:[%s333 + $0xf4] sm:$0xf]
        %v1002 = vld [vmem:[%s333 + $0xf8] sm:$0xf]
        %v1003 = vld [vmem:[%s333 + $0xfc] sm:$0xf]
        %v1020 = vunpack.c.l.b16 %v940
        %v1021 = vunpack.c.l.b16 %v941
        %v1022 = vunpack.c.l.b16 %v942
        %v1023 = vunpack.c.l.b16 %v943
        %v1024 = vunpack.c.l.b16 %v944
        %v1025 = vunpack.c.l.b16 %v945
        %v1026 = vunpack.c.l.b16 %v946
        %v1027 = vunpack.c.l.b16 %v947
        %v1028 = vunpack.c.l.b16 %v948
        %v1029 = vunpack.c.l.b16 %v949
        %v1030 = vunpack.c.l.b16 %v950
        %v1031 = vunpack.c.l.b16 %v951
        %v1032 = vunpack.c.l.b16 %v952
        %v1033 = vunpack.c.l.b16 %v953
        %v1034 = vunpack.c.l.b16 %v954
        %v1035 = vunpack.c.l.b16 %v955
        %v1036 = vpack.c.b16 %v1021, %v1020
        %v1037 = vpack.c.b16 %v1023, %v1022
        %v1038 = vpack.c.b16 %v1025, %v1024
        %v1039 = vpack.c.b16 %v1027, %v1026
        %v1040 = vpack.c.b16 %v1029, %v1028
        %v1041 = vpack.c.b16 %v1031, %v1030
        %v1042 = vpack.c.b16 %v1033, %v1032
        %v1043 = vpack.c.b16 %v1035, %v1034
        %1052 = vmatprep.subr.bf16.mxu0 0
        %1053 = vmatpush1.bf16.msra.mxu0 %v1036
        %1054 = vmatprep.subr.bf16.mxu0 0
        %1055 = vmatpush1.bf16.msra.mxu0 %v1037
        %1056 = vmatprep.subr.bf16.mxu0 0
        %1057 = vmatpush1.bf16.msra.mxu0 %v1038
        %1058 = vmatprep.subr.bf16.mxu0 0
        %1059 = vmatpush1.bf16.msra.mxu0 %v1039
        %1060 = vmatprep.subr.bf16.mxu0 0
        %1061 = vmatpush1.bf16.msra.mxu0 %v1040
        %1062 = vmatprep.subr.bf16.mxu0 0
        %1063 = vmatpush1.bf16.msra.mxu0 %v1041
        %1064 = vmatprep.subr.bf16.mxu0 0
        %1065 = vmatpush1.bf16.msra.mxu0 %v1042
        %1066 = vmatprep.subr.bf16.mxu0 0
        %1067 = vmatpush1.bf16.msra.mxu0 %v1043
        %1068 = vmatprep.subr.bf16.mxu0 0
        %1069 = vmatpush1.bf16.msra.mxu0 0
        %1070 = vmatprep.subr.bf16.mxu0 0
        %1071 = vmatpush1.bf16.msra.mxu0 0
        %1072 = vmatprep.subr.bf16.mxu0 0
        %1073 = vmatpush1.bf16.msra.mxu0 0
        %1074 = vmatprep.subr.bf16.mxu0 0
        %1075 = vmatpush1.bf16.msra.mxu0 0
        %1076 = vmatprep.subr.bf16.mxu0 0
        %1077 = vmatpush1.bf16.msra.mxu0 0
        %1078 = vmatprep.subr.bf16.mxu0 0
        %1079 = vmatpush1.bf16.msra.mxu0 0
        %1080 = vmatprep.subr.bf16.mxu0 0
        %1081 = vmatpush1.bf16.msra.mxu0 0
        %1082 = vmatprep.subr.bf16.mxu0 0
        %1083 = vmatpush1.bf16.msra.mxu0 0
        %1084 = vmatprep.mubr.bf16.mxu0 0
        %1085 = vmatmul.mubr.bf16.gmra.mrb[0].mxu0 %v936
        %v1086 = vpop.f32.mrb[0].mxu0
        %v1087 = vadd.f32 0.0, %v1086
        %v1088 = vpop.f32.mrb[0].mxu0
        %v1089 = vpop.f32.mrb[0].mxu0
        %v1090 = vpop.f32.mrb[0].mxu0
        %1091 = vdwg.mxu0
        %v1108 = vunpack.c.l.b16 %v956
        %v1109 = vunpack.c.l.b16 %v957
        %v1110 = vunpack.c.l.b16 %v958
        %v1111 = vunpack.c.l.b16 %v959
        %v1112 = vunpack.c.l.b16 %v960
        %v1113 = vunpack.c.l.b16 %v961
        %v1114 = vunpack.c.l.b16 %v962
        %v1115 = vunpack.c.l.b16 %v963
        %v1116 = vunpack.c.l.b16 %v964
        %v1117 = vunpack.c.l.b16 %v965
        %v1118 = vunpack.c.l.b16 %v966
        %v1119 = vunpack.c.l.b16 %v967
        %v1120 = vunpack.c.l.b16 %v968
        %v1121 = vunpack.c.l.b16 %v969
        %v1122 = vunpack.c.l.b16 %v970
        %v1123 = vunpack.c.l.b16 %v971
        %v1124 = vpack.c.b16 %v1109, %v1108
        %v1125 = vpack.c.b16 %v1111, %v1110
        %v1126 = vpack.c.b16 %v1113, %v1112
        %v1127 = vpack.c.b16 %v1115, %v1114
        %v1128 = vpack.c.b16 %v1117, %v1116
        %v1129 = vpack.c.b16 %v1119, %v1118
        %v1130 = vpack.c.b16 %v1121, %v1120
        %v1131 = vpack.c.b16 %v1123, %v1122
        %1140 = vmatprep.subr.bf16.mxu0 0
        %1141 = vmatpush1.bf16.msra.mxu0 %v1124
        %1142 = vmatprep.subr.bf16.mxu0 0
        %1143 = vmatpush1.bf16.msra.mxu0 %v1125
        %1144 = vmatprep.subr.bf16.mxu0 0
        %1145 = vmatpush1.bf16.msra.mxu0 %v1126
        %1146 = vmatprep.subr.bf16.mxu0 0
        %1147 = vmatpush1.bf16.msra.mxu0 %v1127
        %1148 = vmatprep.subr.bf16.mxu0 0
        %1149 = vmatpush1.bf16.msra.mxu0 %v1128
        %1150 = vmatprep.subr.bf16.mxu0 0
        %1151 = vmatpush1.bf16.msra.mxu0 %v1129
        %1152 = vmatprep.subr.bf16.mxu0 0
        %1153 = vmatpush1.bf16.msra.mxu0 %v1130
        %1154 = vmatprep.subr.bf16.mxu0 0
        %1155 = vmatpush1.bf16.msra.mxu0 %v1131
        %1156 = vmatprep.subr.bf16.mxu0 0
        %1157 = vmatpush1.bf16.msra.mxu0 0
        %1158 = vmatprep.subr.bf16.mxu0 0
        %1159 = vmatpush1.bf16.msra.mxu0 0
        %1160 = vmatprep.subr.bf16.mxu0 0
        %1161 = vmatpush1.bf16.msra.mxu0 0
        %1162 = vmatprep.subr.bf16.mxu0 0
        %1163 = vmatpush1.bf16.msra.mxu0 0
        %1164 = vmatprep.subr.bf16.mxu0 0
        %1165 = vmatpush1.bf16.msra.mxu0 0
        %1166 = vmatprep.subr.bf16.mxu0 0
        %1167 = vmatpush1.bf16.msra.mxu0 0
        %1168 = vmatprep.subr.bf16.mxu0 0
        %1169 = vmatpush1.bf16.msra.mxu0 0
        %1170 = vmatprep.subr.bf16.mxu0 0
        %1171 = vmatpush1.bf16.msra.mxu0 0
        %1172 = vmatprep.mubr.bf16.mxu0 0
        %1173 = vmatmul.mubr.bf16.gmra.mrb[0].mxu0 %v937
        %v1174 = vpop.f32.mrb[0].mxu0
        %v1175 = vadd.f32 0.0, %v1174
        %v1176 = vpop.f32.mrb[0].mxu0
        %v1177 = vpop.f32.mrb[0].mxu0
        %v1178 = vpop.f32.mrb[0].mxu0
        %1179 = vdwg.mxu0
        %v1196 = vunpack.c.l.b16 %v972
        %v1197 = vunpack.c.l.b16 %v973
        %v1198 = vunpack.c.l.b16 %v974
        %v1199 = vunpack.c.l.b16 %v975
        %v1200 = vunpack.c.l.b16 %v976
        %v1201 = vunpack.c.l.b16 %v977
        %v1202 = vunpack.c.l.b16 %v978
        %v1203 = vunpack.c.l.b16 %v979
        %v1204 = vunpack.c.l.b16 %v980
        %v1205 = vunpack.c.l.b16 %v981
        %v1206 = vunpack.c.l.b16 %v982
        %v1207 = vunpack.c.l.b16 %v983
        %v1208 = vunpack.c.l.b16 %v984
        %v1209 = vunpack.c.l.b16 %v985
        %v1210 = vunpack.c.l.b16 %v986
        %v1211 = vunpack.c.l.b16 %v987
        %v1212 = vpack.c.b16 %v1197, %v1196
        %v1213 = vpack.c.b16 %v1199, %v1198
        %v1214 = vpack.c.b16 %v1201, %v1200
        %v1215 = vpack.c.b16 %v1203, %v1202
        %v1216 = vpack.c.b16 %v1205, %v1204
        %v1217 = vpack.c.b16 %v1207, %v1206
        %v1218 = vpack.c.b16 %v1209, %v1208
        %v1219 = vpack.c.b16 %v1211, %v1210
        %1228 = vmatprep.subr.bf16.mxu0 0
        %1229 = vmatpush1.bf16.msra.mxu0 %v1212
        %1230 = vmatprep.subr.bf16.mxu0 0
        %1231 = vmatpush1.bf16.msra.mxu0 %v1213
        %1232 = vmatprep.subr.bf16.mxu0 0
        %1233 = vmatpush1.bf16.msra.mxu0 %v1214
        %1234 = vmatprep.subr.bf16.mxu0 0
        %1235 = vmatpush1.bf16.msra.mxu0 %v1215
        %1236 = vmatprep.subr.bf16.mxu0 0
        %1237 = vmatpush1.bf16.msra.mxu0 %v1216
        %1238 = vmatprep.subr.bf16.mxu0 0
        %1239 = vmatpush1.bf16.msra.mxu0 %v1217
        %1240 = vmatprep.subr.bf16.mxu0 0
        %1241 = vmatpush1.bf16.msra.mxu0 %v1218
        %1242 = vmatprep.subr.bf16.mxu0 0
        %1243 = vmatpush1.bf16.msra.mxu0 %v1219
        %1244 = vmatprep.subr.bf16.mxu0 0
        %1245 = vmatpush1.bf16.msra.mxu0 0
        %1246 = vmatprep.subr.bf16.mxu0 0
        %1247 = vmatpush1.bf16.msra.mxu0 0
        %1248 = vmatprep.subr.bf16.mxu0 0
        %1249 = vmatpush1.bf16.msra.mxu0 0
        %1250 = vmatprep.subr.bf16.mxu0 0
        %1251 = vmatpush1.bf16.msra.mxu0 0
        %1252 = vmatprep.subr.bf16.mxu0 0
        %1253 = vmatpush1.bf16.msra.mxu0 0
        %1254 = vmatprep.subr.bf16.mxu0 0
        %1255 = vmatpush1.bf16.msra.mxu0 0
        %1256 = vmatprep.subr.bf16.mxu0 0
        %1257 = vmatpush1.bf16.msra.mxu0 0
        %1258 = vmatprep.subr.bf16.mxu0 0
        %1259 = vmatpush1.bf16.msra.mxu0 0
        %1260 = vmatprep.mubr.bf16.mxu0 0
        %1261 = vmatmul.mubr.bf16.gmra.mrb[0].mxu0 %v938
        %v1262 = vpop.f32.mrb[0].mxu0
        %v1263 = vadd.f32 0.0, %v1262
        %v1264 = vpop.f32.mrb[0].mxu0
        %v1265 = vpop.f32.mrb[0].mxu0
        %v1266 = vpop.f32.mrb[0].mxu0
        %1267 = vdwg.mxu0
        %v1284 = vunpack.c.l.b16 %v988
        %v1285 = vunpack.c.l.b16 %v989
        %v1286 = vunpack.c.l.b16 %v990
        %v1287 = vunpack.c.l.b16 %v991
        %v1288 = vunpack.c.l.b16 %v992
        %v1289 = vunpack.c.l.b16 %v993
        %v1290 = vunpack.c.l.b16 %v994
        %v1291 = vunpack.c.l.b16 %v995
        %v1292 = vunpack.c.l.b16 %v996
        %v1293 = vunpack.c.l.b16 %v997
        %v1294 = vunpack.c.l.b16 %v998
        %v1295 = vunpack.c.l.b16 %v999
        %v1296 = vunpack.c.l.b16 %v1000
        %v1297 = vunpack.c.l.b16 %v1001
        %v1298 = vunpack.c.l.b16 %v1002
        %v1299 = vunpack.c.l.b16 %v1003
        %v1300 = vpack.c.b16 %v1285, %v1284
        %v1301 = vpack.c.b16 %v1287, %v1286
        %v1302 = vpack.c.b16 %v1289, %v1288
        %v1303 = vpack.c.b16 %v1291, %v1290
        %v1304 = vpack.c.b16 %v1293, %v1292
        %v1305 = vpack.c.b16 %v1295, %v1294
        %v1306 = vpack.c.b16 %v1297, %v1296
        %v1307 = vpack.c.b16 %v1299, %v1298
        %1316 = vmatprep.subr.bf16.mxu0 0
        %1317 = vmatpush1.bf16.msra.mxu0 %v1300
        %1318 = vmatprep.subr.bf16.mxu0 0
        %1319 = vmatpush1.bf16.msra.mxu0 %v1301
        %1320 = vmatprep.subr.bf16.mxu0 0
        %1321 = vmatpush1.bf16.msra.mxu0 %v1302
        %1322 = vmatprep.subr.bf16.mxu0 0
        %1323 = vmatpush1.bf16.msra.mxu0 %v1303
        %1324 = vmatprep.subr.bf16.mxu0 0
        %1325 = vmatpush1.bf16.msra.mxu0 %v1304
        %1326 = vmatprep.subr.bf16.mxu0 0
        %1327 = vmatpush1.bf16.msra.mxu0 %v1305
        %1328 = vmatprep.subr.bf16.mxu0 0
        %1329 = vmatpush1.bf16.msra.mxu0 %v1306
        %1330 = vmatprep.subr.bf16.mxu0 0
        %1331 = vmatpush1.bf16.msra.mxu0 %v1307
        %1332 = vmatprep.subr.bf16.mxu0 0
        %1333 = vmatpush1.bf16.msra.mxu0 0
        %1334 = vmatprep.subr.bf16.mxu0 0
        %1335 = vmatpush1.bf16.msra.mxu0 0
        %1336 = vmatprep.subr.bf16.mxu0 0
        %1337 = vmatpush1.bf16.msra.mxu0 0
        %1338 = vmatprep.subr.bf16.mxu0 0
        %1339 = vmatpush1.bf16.msra.mxu0 0
        %1340 = vmatprep.subr.bf16.mxu0 0
        %1341 = vmatpush1.bf16.msra.mxu0 0
        %1342 = vmatprep.subr.bf16.mxu0 0
        %1343 = vmatpush1.bf16.msra.mxu0 0
        %1344 = vmatprep.subr.bf16.mxu0 0
        %1345 = vmatpush1.bf16.msra.mxu0 0
        %1346 = vmatprep.subr.bf16.mxu0 0
        %1347 = vmatpush1.bf16.msra.mxu0 0
        %1348 = vmatprep.mubr.bf16.mxu0 0
        %1349 = vmatmul.mubr.bf16.gmra.mrb[0].mxu0 %v939
        %v1350 = vpop.f32.mrb[0].mxu0
        %v1351 = vadd.f32 0.0, %v1350
        %v1352 = vpop.f32.mrb[0].mxu0
        %v1353 = vpop.f32.mrb[0].mxu0
        %v1354 = vpop.f32.mrb[0].mxu0
        %1355 = vdwg.mxu0
        %v1356 = vld [vmem:[#allocation4] sm:$0xff]
        %v1357 = vld [vmem:[#allocation4 + $0x8] sm:$0xff]
        %v1358 = vld [vmem:[#allocation4 + $0x10] sm:$0xff]
        %v1359 = vld [vmem:[#allocation4 + $0x18] sm:$0xff]
        %1361 = vset.pattern.permute.xlu0 0
        %1362 = vperm.xlu0 %1361, %v897
        %v1363 = vpop.permute.xlu0 %1362
        %1366 = vset.pattern.permute.xlu0 0
        %1367 = vperm.xlu0 %1366, %v899
        %v1368 = vpop.permute.xlu0 %1367
        %1371 = vset.pattern.permute.xlu0 0
        %1372 = vperm.xlu0 %1371, %v901
        %v1373 = vpop.permute.xlu0 %1372
        %1376 = vset.pattern.permute.xlu0 0
        %1377 = vperm.xlu0 %1376, %v903
        %v1378 = vpop.permute.xlu0 %1377
        %v1380 = vmul.f32 %v1356, %v1363
        %v1381 = vmul.f32 %v1357, %v1368
        %v1382 = vmul.f32 %v1358, %v1373
        %v1383 = vmul.f32 %v1359, %v1378
        %v1384 = vadd.f32 %v1380, %v1087
        %v1385 = vadd.f32 %v1381, %v1175
        %v1386 = vadd.f32 %v1382, %v1263
        %v1387 = vadd.f32 %v1383, %v1351
        %vm1388 = vcmask 269312
        %1389 = vst.msk [vmem:[#allocation4] sm:$0xff] %vm1388, %v1384
        %1390 = vst.msk [vmem:[#allocation4 + $0x8] sm:$0xff] %vm1388, %v1385
        %1391 = vst.msk [vmem:[#allocation4 + $0x10] sm:$0xff] %vm1388, %v1386
        %1392 = vst.msk [vmem:[#allocation4 + $0x18] sm:$0xff] %vm1388, %v1387
        %1393 = vst [vmem:[#allocation3] sm:$0xff] %v888
        %1394 = vst [vmem:[#allocation3 + $0x8] sm:$0xff] %v889
        %1395 = vst [vmem:[#allocation3 + $0x10] sm:$0xff] %v890
        %1396 = vst [vmem:[#allocation3 + $0x18] sm:$0xff] %v891
        // Predicated region
        $region37: #{tpu_custom_call.1} parent=31 // pred_check
          %p1397 = pneg %p337
        $region38: #{tpu_custom_call.1} parent=31 // pred_check_branch
          %1399 = sbr.rel (%p1397) target = $region40
        $region39: #{tpu_custom_call.1} parent=31 // pred_region
          %v1400 = vld [vmem:[#allocation4] sm:$0xff]
          %v1401 = vld [vmem:[#allocation4 + $0x8] sm:$0xff]
          %v1402 = vld [vmem:[#allocation4 + $0x10] sm:$0xff]
          %v1403 = vld [vmem:[#allocation4 + $0x18] sm:$0xff]
          %v1404 = vrcp.pop %v1400
          %v1405 = vmul.f32 1.0, %v1404
          %v1406 = vrcp.pop %v1401
          %v1407 = vmul.f32 1.0, %v1406
          %v1408 = vrcp.pop %v1402
          %v1409 = vmul.f32 1.0, %v1408
          %v1410 = vrcp.pop %v1403
          %v1411 = vmul.f32 1.0, %v1410
          %1413 = vset.pattern.permute.xlu0 32
          %1414 = vperm.xlu0 %1413, %v1405
          %v1415 = vpop.permute.xlu0 %1414
          %1418 = vset.pattern.permute.xlu0 32
          %1419 = vperm.xlu0 %1418, %v1407
          %v1420 = vpop.permute.xlu0 %1419
          %1423 = vset.pattern.permute.xlu0 32
          %1424 = vperm.xlu0 %1423, %v1409
          %v1425 = vpop.permute.xlu0 %1424
          %1428 = vset.pattern.permute.xlu0 32
          %1429 = vperm.xlu0 %1428, %v1411
          %v1430 = vpop.permute.xlu0 %1429
          %v1432 = vmul.f32 %v1400, %v1415
          %v1433 = vmul.f32 %v1401, %v1420
          %v1434 = vmul.f32 %v1402, %v1425
          %v1435 = vmul.f32 %v1403, %v1430
          %1437 = vrot.lane.b32.xlu0 %v1433, 32
          %v1438 = vpop.permute.xlu0 %1437
          %1441 = vrot.lane.b32.xlu0 %v1434, 64
          %v1442 = vpop.permute.xlu0 %1441
          %1445 = vrot.lane.b32.xlu0 %v1435, 96
          %v1446 = vpop.permute.xlu0 %1445
          %v1448 = vsel %vm475, %v1432, %v1438
          %vm1449 = vcmask 523264
          %v1450 = vsel %vm1449, %v1448, %v1442
          %vm1451 = vcmask 785408
          %v1452 = vsel %vm1451, %v1450, %v1446
          %1453 = vst [vmem:[%s290] sm:$0xff] %v1452
        $region40: #{tpu_custom_call.1} parent=31 // pred_fallthru
          _
        %s1454 = sand.u32 %s145, 1
        %s1455 = scalar_lea.sflag [#allocation6], %s1454
        %s1456 = sand.u32 %s145, 1
        %s1457 = smul.addr %s1456, 8
        %s1458 = scalar_lea.vmem [#allocation5], %s1457
        // Predicated region
        $region41: #{tpu_custom_call.1} parent=31 // pred_check
          %p1459 = pneg %p155
        $region42: #{tpu_custom_call.1} parent=31 // pred_check_branch
          %1461 = sbr.rel (%p1459) target = $region44
        $region43: #{tpu_custom_call.1} parent=31 // pred_region
          %s1463 = ssub.s32 128, 128
          %1464 = vsyncadd %s1455, %s1463
          %s1465 = sadd.s32 %s25, %s24
          %s1466 = sadd.s32 %s1465, %s23
          %s1467 = smul.addr %s1466, 128
          %s1468 = scalar_lea.hbm %s3, %s1467
          %s1470 = sshll.u32 %s1458, 4
          %s1471 = int_to_ptr.vmem [resolvable:$true] %s1470
          %1473 = dma.vmem_to_hbm [thread:$0]  %s1471, 128, %s1468, %s1455
        $region44: #{tpu_custom_call.1} parent=31 // pred_fallthru
          _
      $region32: #{tpu_custom_call.1} parent=5 // pred_fallthru
        _
      %p1474 = scmp.le.s32.totalorder 2, %s12
      // Predicated region
      $region45: #{tpu_custom_call.1} parent=5 // pred_check
        %p1475 = pneg %p1474
      $region46: #{tpu_custom_call.1} parent=5 // pred_check_branch
        %1477 = sbr.rel (%p1475) target = $region48
      $region47: #{tpu_custom_call.1} parent=5 // pred_region
        %s1478 = ssub.s32 %s12, 2
        // Predicated region
        $region49: #{tpu_custom_call.1} parent=47 // pred_check
          %p1479 = pneg %p161
        $region50: #{tpu_custom_call.1} parent=47 // pred_check_branch
          %1481 = sbr.rel (%p1479) target = $region52
        $region51: #{tpu_custom_call.1} parent=47 // pred_region
          %s1482 = sand.u32 %s146, 1
          %s1483 = scalar_lea.sflag [#allocation6], %s1482
          %s1484 = sand.u32 %s146, 1
          %s1485 = smul.addr %s1484, 8
          %s1486 = scalar_lea.vmem [#allocation5], %s1485
          %1487 = dma.done %s1483, 128
        $region52: #{tpu_custom_call.1} parent=47 // pred_fallthru
          _
      $region48: #{tpu_custom_call.1} parent=5 // pred_fallthru
        _
    $region6: #{tpu_custom_call.1} parent=1 // loop_footer
      %s16 = sadd.s32 1, %s12
    $region7: #{tpu_custom_call.1} parent=1 // loop_footer_branch
      %11 = sbr.rel target = $region3
    $region8: #{tpu_custom_call.1} parent=1 // loop_exit
      _
    %1488 = vsyncpa [#allocation6], 1
    %s1489 = scalar_lea.sflag [#allocation6], 1
    %1490 = vsyncpa %s1489, 1

</llo_original>
